<compile_context>
chip_gen: v7x
topology: tpu7x:2x2x1
jax: 0.10.0
libtpu: 0.0.40
codegen_flags: <defaults>
</compile_context>

<pallas_src>
import jax
import jax.numpy as jnp
from jax import lax
from jax.experimental import pallas as pl
from jax.experimental.pallas import tpu as pltpu


_NEG_PAD = -1e30  # finite "-inf" for padded classes: exp underflows to exactly 0


# --------------------------------------------------------------------------- #
# Kernel
# --------------------------------------------------------------------------- #
def mlp_logsoftmax_kernel(x_ref, w_ref, b_ref, o_ref, acc_ref):
    # x_ref: (TB, TK)   w_ref: (TK, d_out_p)   b_ref: (1, d_out_p) f32
    # o_ref: (TB, d_out_p)   acc_ref: (TB, d_out_p) f32 scratch
    k = pl.program_id(1)
    nk = pl.num_programs(1)

    # f32 operands only occur for tiny contractions (the wrapper casts large
    # ones to bf16); use HIGHEST there so numerics stay exact at negligible cost.
    precision = (lax.Precision.HIGHEST if x_ref.dtype == jnp.float32
                 else lax.Precision.DEFAULT)
    prod = jnp.dot(x_ref[...], w_ref[...],
                   preferred_element_type=jnp.float32, precision=precision)

    @pl.when(k == 0)
    def _first():          # no zero-fill + add: saves a full-tile store pass (v5e)
        acc_ref[...] = prod

    @pl.when(k > 0)
    def _accumulate():     # += form keeps v7x MRB in-place accumulation
        acc_ref[...] += prod

    @pl.when(k == nk - 1)
    def _epilogue():
        logits = acc_ref[...] + b_ref[...]     # padded classes carry a -1e30 bias
        # Numerically-stable log-softmax over the lane-dense padded class axis.
        m = jnp.max(logits, axis=-1, keepdims=True)
        shifted = logits - m
        lse = jnp.log(jnp.sum(jnp.exp(shifted), axis=-1, keepdims=True))
        o_ref[...] = (shifted - lse).astype(o_ref.dtype)


# --------------------------------------------------------------------------- #
# Tiling helpers
# --------------------------------------------------------------------------- #
def _round_up(x, m):
    return ((x + m - 1) // m) * m


def _sublane_align(itemsize):
    # rows per packed sublane group: f32 -> 8, bf16 -> 16, int8/fp8 -> 32
    return {4: 8, 2: 16, 1: 32}.get(int(itemsize), 8)


def _vmem_capacity_bytes():
    try:
        return int(pltpu.get_tpu_info().vmem_capacity_bytes)
    except Exception:
        return 64 * 1024 * 1024  # v7x per-TensorCore VMEM — conservative fallback


def _vmem_need(block_b, block_k, nk, d_out_p, in_itemsize, out_itemsize):
    """Resident VMEM bytes for one grid step (pipeline-buffering aware)."""
    w_bufs = 1 if nk == 1 else 2           # grid-invariant weight => single-buffered
    return (2 * block_b * block_k * in_itemsize          # x tile (double-buffered)
            + w_bufs * block_k * d_out_p * in_itemsize   # weight tile
            + 8 * d_out_p * 4                            # bias (f32, 8-sublane pad, 1 buf)
            + 2 * block_b * d_out_p * out_itemsize       # output tile (double-buffered)
            + block_b * d_out_p * 4)                     # f32 accumulator scratch


# --------------------------------------------------------------------------- #
# Module wrapper (weight prep hoisted out of the per-call hot path)
# --------------------------------------------------------------------------- #
class PallasMLP:
    """y = log_softmax(x @ W.T + b, axis=-1) with W in nn.Linear (d_out, d_in) layout."""

    def __init__(self, weight, bias, *, out_dtype=None, mxu_dtype=None,
                 interpret=False):
        d_out, d_in = weight.shape
        self.d_in = int(d_in)
        self.d_out = int(d_out)
        self.out_dtype = (jnp.dtype(out_dtype) if out_dtype is not None
                          else jnp.dtype(weight.dtype))
        self.interpret = interpret

        # MXU input dtype: bf16 halves HBM/VMEM traffic and runs the MXU at full
        # rate; auto-enabled only when the contraction is big enough to matter
        # (tiny d_in stays exactly f32 — those shapes are epilogue/EUP-bound).
        if mxu_dtype is None:
            if jnp.dtype(weight.dtype) == jnp.float32 and self.d_in >= 256:
                mxu_dtype = jnp.bfloat16
            else:
                mxu_dtype = weight.dtype
        self.mxu_dtype = jnp.dtype(mxu_dtype)
        self._in_it = self.mxu_dtype.itemsize
        self._out_it = self.out_dtype.itemsize
        self._b_align = _sublane_align(self._in_it)

        # Lane-dense class axis (128) and contraction axis (256).
        self.d_out_p = _round_up(self.d_out, 128)
        d_in_p0 = _round_up(self.d_in, 256)

        # VMEM budget: single allowance + fixed Mosaic-scratch reserve
        # (no stacked 0.75*0.8 discounting).
        vmem_cap = min(_vmem_capacity_bytes(), 128 * 1024 * 1024)
        self.vmem_limit = max(vmem_cap - (2 << 20), 32 << 20)
        self._tile_budget = self.vmem_limit - (6 << 20)

        self.block_k = self._pick_block_k(d_in_p0)
        self.d_in_p = _round_up(d_in_p0, self.block_k)

        # TODO(synk): for very large d_out, where the (block_k, d_out_p) weight
        # block + full-width accumulator overflow VMEM even at block_k=128, add
        # class-axis (N) tiling with an online log-softmax instead of letting
        # the batch tile collapse toward 8 rows.

        # One-time parameter prep (hoisted): transpose + pad W, pad bias with a
        # finite "-inf" so padded classes vanish from the normalization.
        self.w_p = jnp.pad(
            weight.T.astype(self.mxu_dtype),
            ((0, self.d_in_p - self.d_in), (0, self.d_out_p - self.d_out)))
        self.b_p = jnp.pad(
            bias.astype(jnp.float32), (0, self.d_out_p - self.d_out),
            constant_values=_NEG_PAD).reshape(1, self.d_out_p)

    # -- tile selection ----------------------------------------------------- #
    def _pick_block_k(self, d_in_p0, nominal_bb=512):
        """Largest lane-dense K chunk that fits the budget at the max batch tile."""
        def need(bk):
            nk = pl.cdiv(d_in_p0, bk)
            return _vmem_need(nominal_bb, bk, nk, self.d_out_p,
                              self._in_it, self._out_it)
        bk = d_in_p0                                   # prefer K-grid == 1
        while need(bk) > self._tile_budget and bk > 256:
            bk = max(256, _round_up(bk // 2, 256))     # shrink K first
        while need(bk) > self._tile_budget and bk > 128:
            bk = max(128, _round_up(bk // 2, 128))     # last K notch
        return bk

    def _pick_block_b(self, B):
        align = self._b_align
        # Large enough to feed the MXU and amortize the EUP-heavy epilogue,
        # capped so >=2 batch tiles exist (megacore / v7x 2-TC sharding) once
        # the batch is large enough to split.
        if B >= 256:
            bb = min(512, _round_up(pl.cdiv(B, 2), 128))
        else:
            bb = _round_up(max(B, 1), align)
        bb = max(bb, align)

        nk = self.d_in_p // self.block_k

        def need(b):
            return _vmem_need(b, self.block_k, nk, self.d_out_p,
                              self._in_it, self._out_it)

        # Hold a >=256-row floor (MXU systolic height on v6e/v7x; 2x v5e floor)
        # before giving in further; K was already shrunk at __init__.
        floor_hi = max(align, min(256, _round_up(B, align)))
        while need(bb) > self._tile_budget and bb > floor_hi:
            bb = max(floor_hi, _round_up(bb // 2, align))
        while need(bb) > self._tile_budget and bb > align:
            bb = max(align, _round_up(bb // 2, align))
        return bb

    # -- pallas call --------------------------------------------------------- #
    def _run(self, x_p, block_b, B_p, nk, cost, single_buffer):
        block_k = self.block_k
        d_out_p = self.d_out_p

        def spec(shape, index_map, nbuf=None):
            if nbuf is not None and single_buffer and hasattr(pl, "Buffered"):
                return pl.BlockSpec(shape, index_map,
                                    pipeline_mode=pl.Buffered(nbuf))
            return pl.BlockSpec(shape, index_map)

        in_specs = [
            pl.BlockSpec((block_b, block_k), lambda i, k: (i, k)),
            # weight: single-buffer when grid-invariant (K-grid == 1)
            spec((block_k, d_out_p), lambda i, k: (k, 0),
                 nbuf=1 if nk == 1 else None),
            # bias: always grid-invariant -> single-buffer
            spec((1, d_out_p), lambda i, k: (0, 0), nbuf=1),
        ]

        return pl.pallas_call(
            mlp_logsoftmax_kernel,
            out_shape=jax.ShapeDtypeStruct((B_p, d_out_p), self.out_dtype),
            grid_spec=pltpu.PrefetchScalarGridSpec(
                num_scalar_prefetch=0,
                grid=(B_p // block_b, nk),
                in_specs=in_specs,
                out_specs=pl.BlockSpec((block_b, d_out_p), lambda i, k: (i, 0)),
                scratch_shapes=[pltpu.VMEM((block_b, d_out_p), jnp.float32)],
            ),
            compiler_params=pltpu.CompilerParams(
                dimension_semantics=("parallel", "arbitrary"),
                vmem_limit_bytes=self.vmem_limit,
            ),
            cost_estimate=cost,
            interpret=self.interpret,
        )(x_p, self.w_p, self.b_p)

    def __call__(self, x):
        B, d_in = x.shape
        if d_in != self.d_in:
            raise ValueError(f"expected d_in={self.d_in}, got {d_in}")

        block_b = self._pick_block_b(B)
        B_p = _round_up(B, block_b)
        nk = self.d_in_p // self.block_k
        n_btiles = B_p // block_b

        x_p = jnp.pad(x.astype(self.mxu_dtype),
                      ((0, B_p - B), (0, self.d_in_p - d_in)))

        # Advisory cost estimate: weight is re-streamed once per batch tile only
        # when K is tiled; VMEM-resident (read once) when nk == 1.
        flops = 2 * B_p * self.d_in_p * self.d_out_p + 6 * B_p * self.d_out_p
        transcendentals = B_p * self.d_out_p + B_p
        w_reads = n_btiles if nk > 1 else 1
        bytes_accessed = (x_p.size * x_p.dtype.itemsize
                          + self.w_p.size * self.w_p.dtype.itemsize * w_reads
                          + self.b_p.size * self.b_p.dtype.itemsize
                          + B_p * self.d_out_p * self._out_it)
        cost = pl.CostEstimate(flops=flops, transcendentals=transcendentals,
                               bytes_accessed=bytes_accessed)

        try:
            out_p = self._run(x_p, block_b, B_p, nk, cost, single_buffer=True)
        except Exception:
            # pipeline_mode=pl.Buffered(1) unsupported in this jax build:
            # retry with default double-buffering (identical semantics).
            out_p = self._run(x_p, block_b, B_p, nk, cost, single_buffer=False)

        # Note: with a float16 out_dtype, the padded-class columns (≈ -1e30)
        # saturate to -inf inside the padded output; they are stripped here.
        return out_p[:B, :self.d_out]


def mlp_forward(x, weight, bias, **kwargs):
    """One-shot convenience wrapper (weight prep not amortized across calls)."""
    return PallasMLP(weight, bias, **kwargs)(x)


# --------------------------------------------------------------------------- #
# Demo / self-check
# --------------------------------------------------------------------------- #
if __name__ == "__main__":
    # Small shapes consistent with the module: batch=8, d_in=32, d_out=16.
    B, d_in, d_out = 8, 32, 16

    key = jax.random.PRNGKey(0)
    kx, kw, kb = jax.random.split(key, 3)

    x = jax.random.normal(kx, (B, d_in), dtype=jnp.float32)
    # Deterministic init mimicking nn.Linear's uniform(-1/sqrt(d_in), 1/sqrt(d_in))
    bound = 1.0 / (d_in ** 0.5)
    weight = jax.random.uniform(kw, (d_out, d_in), minval=-bound, maxval=bound,
                                dtype=jnp.float32)
    bias = jax.random.uniform(kb, (d_out,), minval=-bound, maxval=bound,
                              dtype=jnp.float32)

    mlp = PallasMLP(weight, bias)       # one-time W.T + pad (hoisted off hot path)
    out = jax.block_until_ready(mlp(x))

    # Reference (same semantics as Linear + LogSoftmax(dim=1)); HIGHEST so the
    # reference itself doesn't introduce bf16-pass error.
    ref_logits = jnp.dot(x, weight.T, precision=lax.Precision.HIGHEST) + bias
    ref = jax.nn.log_softmax(ref_logits, axis=-1)

    assert out.shape == ref.shape, f"shape mismatch {out.shape} vs {ref.shape}"
    assert jnp.allclose(out, ref, atol=1e-4, rtol=1e-4), (
        f"mismatch vs reference, max abs err = {jnp.max(jnp.abs(out - ref))}")

    print("KERNEL_OK")
</pallas_src>

<mosaic_0001>
module attributes {stable_mosaic.version = 11 : i64} {
  func.func @mlp_logsoftmax_kernel(%arg0: i32, %arg1: i32, %arg2: memref<8x256xf32, #tpu.memory_space<vmem>>, %arg3: memref<256x128xf32, #tpu.memory_space<vmem>>, %arg4: memref<1x128xf32, #tpu.memory_space<vmem>>, %arg5: memref<8x128xf32, #tpu.memory_space<vmem>>, %arg6: memref<8x128xf32, #tpu.memory_space<vmem>>) attributes {dimension_semantics = [#tpu.dimension_semantics<parallel>, #tpu.dimension_semantics<arbitrary>], iteration_bounds = array<i64: 1, 1>, scalar_prefetch = 0 : i64, scratch_operands = 1 : i64, tpu.core_type = #tpu.core_type<tc>, window_params = [{transform_indices = @transform_0, window_bounds = array<i64: 8, 256>}, {pipeline_mode = #tpu.pipeline_mode<synchronous>, transform_indices = @transform_1, window_bounds = array<i64: 256, 128>}, {pipeline_mode = #tpu.pipeline_mode<synchronous>, transform_indices = @transform_2, window_bounds = array<i64: 1, 128>}, {transform_indices = @transform_3, window_bounds = array<i64: 8, 128>}]} {
    %c0 = arith.constant 0 : index
    %c0_0 = arith.constant 0 : index
    %0 = vector.load %arg2[%c0, %c0_0] : memref<8x256xf32, #tpu.memory_space<vmem>>, vector<8x256xf32>
    %c0_1 = arith.constant 0 : index
    %c0_2 = arith.constant 0 : index
    %1 = vector.load %arg3[%c0_1, %c0_2] : memref<256x128xf32, #tpu.memory_space<vmem>>, vector<256x128xf32>
    %cst = arith.constant dense<0.000000e+00> : vector<8x128xf32>
    %2 = tpu.matmul %0, %1, %cst {dimension_numbers = #tpu.dot_dimension_numbers<[1], [0], [0], [1], [0, 0, 1, 1], [], []>, precision = #tpu.contract_precision<fp32>} : vector<8x256xf32>, vector<256x128xf32>, vector<8x128xf32> -> vector<8x128xf32>
    %c0_i32 = arith.constant 0 : i32
    %3 = arith.cmpi eq, %arg1, %c0_i32 : i32
    %4 = arith.extui %3 : i1 to i32
    %c0_i32_3 = arith.constant 0 : i32
    %5 = arith.cmpi ne, %4, %c0_i32_3 : i32
    scf.if %5 {
      %c0_8 = arith.constant 0 : index
      %c0_9 = arith.constant 0 : index
      %12 = vector.load %arg6[%c0_8, %c0_9] : memref<8x128xf32, #tpu.memory_space<vmem>>, vector<8x128xf32>
      tpu.vector_store %arg6[%c0_8, %c0_9], %2 {strides = array<i32>} : memref<8x128xf32, #tpu.memory_space<vmem>>, vector<8x128xf32>,
    } else {
    }
    %c0_i32_4 = arith.constant 0 : i32
    %6 = arith.cmpi sgt, %arg1, %c0_i32_4 : i32
    %7 = arith.extui %6 : i1 to i32
    %c0_i32_5 = arith.constant 0 : i32
    %8 = arith.cmpi ne, %7, %c0_i32_5 : i32
    scf.if %8 {
      %c0_8 = arith.constant 0 : index
      %c0_9 = arith.constant 0 : index
      %12 = vector.load %arg6[%c0_8, %c0_9] : memref<8x128xf32, #tpu.memory_space<vmem>>, vector<8x128xf32>
      %13 = arith.addf %12, %2 : vector<8x128xf32>
      %c0_10 = arith.constant 0 : index
      %c0_11 = arith.constant 0 : index
      %14 = vector.load %arg6[%c0_10, %c0_11] : memref<8x128xf32, #tpu.memory_space<vmem>>, vector<8x128xf32>
      tpu.vector_store %arg6[%c0_10, %c0_11], %13 {strides = array<i32>} : memref<8x128xf32, #tpu.memory_space<vmem>>, vector<8x128xf32>,
    } else {
    }
    %c0_i32_6 = arith.constant 0 : i32
    %9 = arith.cmpi eq, %arg1, %c0_i32_6 : i32
    %10 = arith.extui %9 : i1 to i32
    %c0_i32_7 = arith.constant 0 : i32
    %11 = arith.cmpi ne, %10, %c0_i32_7 : i32
    scf.if %11 {
      %c0_8 = arith.constant 0 : index
      %c0_9 = arith.constant 0 : index
      %12 = vector.load %arg6[%c0_8, %c0_9] : memref<8x128xf32, #tpu.memory_space<vmem>>, vector<8x128xf32>
      %c0_10 = arith.constant 0 : index
      %c0_11 = arith.constant 0 : index
      %13 = vector.load %arg4[%c0_10, %c0_11] : memref<1x128xf32, #tpu.memory_space<vmem>>, vector<1x128xf32>
      %14 = vector.broadcast %13 : vector<1x128xf32> to vector<8x128xf32>
      %15 = arith.addf %12, %14 : vector<8x128xf32>
      %cst_12 = arith.constant dense<0xFF800000> : vector<8xf32>
      %16 = vector.multi_reduction <maximumf>, %15, %cst_12 [1] : vector<8x128xf32> to vector<8xf32>
      %17 = vector.shape_cast %16 : vector<8xf32> to vector<8x1xf32>
      %18 = vector.broadcast %17 : vector<8x1xf32> to vector<8x128xf32>
      %19 = arith.subf %15, %18 : vector<8x128xf32>
      %20 = math.exp %19 : vector<8x128xf32>
      %cst_13 = arith.constant dense<0.000000e+00> : vector<8xf32>
      %21 = vector.multi_reduction <add>, %20, %cst_13 [1] : vector<8x128xf32> to vector<8xf32>
      %22 = vector.shape_cast %21 : vector<8xf32> to vector<8x1xf32>
      %23 = math.log %22 : vector<8x1xf32>
      %24 = vector.broadcast %23 : vector<8x1xf32> to vector<8x128xf32>
      %25 = arith.subf %19, %24 : vector<8x128xf32>
      %c0_14 = arith.constant 0 : index
      %c0_15 = arith.constant 0 : index
      %26 = vector.load %arg5[%c0_14, %c0_15] : memref<8x128xf32, #tpu.memory_space<vmem>>, vector<8x128xf32>
      tpu.vector_store %arg5[%c0_14, %c0_15], %25 {strides = array<i32>} : memref<8x128xf32, #tpu.memory_space<vmem>>, vector<8x128xf32>,
    } else {
    }
    return
  }
  func.func @transform_0(%arg0: i32, %arg1: i32) -> (i32, i32) {
    %c0_i32 = arith.constant 0 : i32
    return %arg0, %arg1 : i32, i32
  }
  func.func @transform_1(%arg0: i32, %arg1: i32) -> (i32, i32) {
    %c0_i32 = arith.constant 0 : i32
    %c0_i32_0 = arith.constant 0 : i32
    return %arg1, %c0_i32 : i32, i32
  }
  func.func @transform_2(%arg0: i32, %arg1: i32) -> (i32, i32) {
    %c0_i32 = arith.constant 0 : i32
    %c0_i32_0 = arith.constant 0 : i32
    %c0_i32_1 = arith.constant 0 : i32
    return %c0_i32, %c0_i32_0 : i32, i32
  }
  func.func @transform_3(%arg0: i32, %arg1: i32) -> (i32, i32) {
    %c0_i32 = arith.constant 0 : i32
    %c0_i32_0 = arith.constant 0 : i32
    return %arg0, %c0_i32 : i32, i32
  }
}

module attributes {stable_mosaic.version = 11 : i64} {
  func.func @mlp_logsoftmax_kernel(%arg0: i32, %arg1: i32, %arg2: memref<8x256xf32, #tpu.memory_space<vmem>>, %arg3: memref<256x128xf32, #tpu.memory_space<vmem>>, %arg4: memref<1x128xf32, #tpu.memory_space<vmem>>, %arg5: memref<8x128xf32, #tpu.memory_space<vmem>>, %arg6: memref<8x128xf32, #tpu.memory_space<vmem>>) attributes {dimension_semantics = [#tpu.dimension_semantics<parallel>, #tpu.dimension_semantics<arbitrary>], iteration_bounds = array<i64: 1, 1>, scalar_prefetch = 0 : i64, scratch_operands = 1 : i64, tpu.core_type = #tpu.core_type<tc>, window_params = [{transform_indices = @transform_0, window_bounds = array<i64: 8, 256>}, {transform_indices = @transform_1, window_bounds = array<i64: 256, 128>}, {pipeline_mode = #tpu.pipeline_mode<synchronous>, transform_indices = @transform_2, window_bounds = array<i64: 1, 128>}, {transform_indices = @transform_3, window_bounds = array<i64: 8, 128>}]} {
    %c0 = arith.constant 0 : index
    %c0_0 = arith.constant 0 : index
    %0 = vector.load %arg2[%c0, %c0_0] : memref<8x256xf32, #tpu.memory_space<vmem>>, vector<8x256xf32>
    %c0_1 = arith.constant 0 : index
    %c0_2 = arith.constant 0 : index
    %1 = vector.load %arg3[%c0_1, %c0_2] : memref<256x128xf32, #tpu.memory_space<vmem>>, vector<256x128xf32>
    %cst = arith.constant dense<0.000000e+00> : vector<8x128xf32>
    %2 = tpu.matmul %0, %1, %cst {dimension_numbers = #tpu.dot_dimension_numbers<[1], [0], [0], [1], [0, 0, 1, 1], [], []>, precision = #tpu.contract_precision<fp32>} : vector<8x256xf32>, vector<256x128xf32>, vector<8x128xf32> -> vector<8x128xf32>
    %c0_i32 = arith.constant 0 : i32
    %3 = arith.cmpi eq, %arg1, %c0_i32 : i32
    %4 = arith.extui %3 : i1 to i32
    %c0_i32_3 = arith.constant 0 : i32
    %5 = arith.cmpi ne, %4, %c0_i32_3 : i32
    scf.if %5 {
      %c0_8 = arith.constant 0 : index
      %c0_9 = arith.constant 0 : index
      %12 = vector.load %arg6[%c0_8, %c0_9] : memref<8x128xf32, #tpu.memory_space<vmem>>, vector<8x128xf32>
      tpu.vector_store %arg6[%c0_8, %c0_9], %2 {strides = array<i32>} : memref<8x128xf32, #tpu.memory_space<vmem>>, vector<8x128xf32>,
    } else {
    }
    %c0_i32_4 = arith.constant 0 : i32
    %6 = arith.cmpi sgt, %arg1, %c0_i32_4 : i32
    %7 = arith.extui %6 : i1 to i32
    %c0_i32_5 = arith.constant 0 : i32
    %8 = arith.cmpi ne, %7, %c0_i32_5 : i32
    scf.if %8 {
      %c0_8 = arith.constant 0 : index
      %c0_9 = arith.constant 0 : index
      %12 = vector.load %arg6[%c0_8, %c0_9] : memref<8x128xf32, #tpu.memory_space<vmem>>, vector<8x128xf32>
      %13 = arith.addf %12, %2 : vector<8x128xf32>
      %c0_10 = arith.constant 0 : index
      %c0_11 = arith.constant 0 : index
      %14 = vector.load %arg6[%c0_10, %c0_11] : memref<8x128xf32, #tpu.memory_space<vmem>>, vector<8x128xf32>
      tpu.vector_store %arg6[%c0_10, %c0_11], %13 {strides = array<i32>} : memref<8x128xf32, #tpu.memory_space<vmem>>, vector<8x128xf32>,
    } else {
    }
    %c0_i32_6 = arith.constant 0 : i32
    %9 = arith.cmpi eq, %arg1, %c0_i32_6 : i32
    %10 = arith.extui %9 : i1 to i32
    %c0_i32_7 = arith.constant 0 : i32
    %11 = arith.cmpi ne, %10, %c0_i32_7 : i32
    scf.if %11 {
      %c0_8 = arith.constant 0 : index
      %c0_9 = arith.constant 0 : index
      %12 = vector.load %arg6[%c0_8, %c0_9] : memref<8x128xf32, #tpu.memory_space<vmem>>, vector<8x128xf32>
      %c0_10 = arith.constant 0 : index
      %c0_11 = arith.constant 0 : index
      %13 = vector.load %arg4[%c0_10, %c0_11] : memref<1x128xf32, #tpu.memory_space<vmem>>, vector<1x128xf32>
      %14 = vector.broadcast %13 : vector<1x128xf32> to vector<8x128xf32>
      %15 = arith.addf %12, %14 : vector<8x128xf32>
      %cst_12 = arith.constant dense<0xFF800000> : vector<8xf32>
      %16 = vector.multi_reduction <maximumf>, %15, %cst_12 [1] : vector<8x128xf32> to vector<8xf32>
      %17 = vector.shape_cast %16 : vector<8xf32> to vector<8x1xf32>
      %18 = vector.broadcast %17 : vector<8x1xf32> to vector<8x128xf32>
      %19 = arith.subf %15, %18 : vector<8x128xf32>
      %20 = math.exp %19 : vector<8x128xf32>
      %cst_13 = arith.constant dense<0.000000e+00> : vector<8xf32>
      %21 = vector.multi_reduction <add>, %20, %cst_13 [1] : vector<8x128xf32> to vector<8xf32>
      %22 = vector.shape_cast %21 : vector<8xf32> to vector<8x1xf32>
      %23 = math.log %22 : vector<8x1xf32>
      %24 = vector.broadcast %23 : vector<8x1xf32> to vector<8x128xf32>
      %25 = arith.subf %19, %24 : vector<8x128xf32>
      %c0_14 = arith.constant 0 : index
      %c0_15 = arith.constant 0 : index
      %26 = vector.load %arg5[%c0_14, %c0_15] : memref<8x128xf32, #tpu.memory_space<vmem>>, vector<8x128xf32>
      tpu.vector_store %arg5[%c0_14, %c0_15], %25 {strides = array<i32>} : memref<8x128xf32, #tpu.memory_space<vmem>>, vector<8x128xf32>,
    } else {
    }
    return
  }
  func.func @transform_0(%arg0: i32, %arg1: i32) -> (i32, i32) {
    %c0_i32 = arith.constant 0 : i32
    return %arg0, %arg1 : i32, i32
  }
  func.func @transform_1(%arg0: i32, %arg1: i32) -> (i32, i32) {
    %c0_i32 = arith.constant 0 : i32
    %c0_i32_0 = arith.constant 0 : i32
    return %arg1, %c0_i32 : i32, i32
  }
  func.func @transform_2(%arg0: i32, %arg1: i32) -> (i32, i32) {
    %c0_i32 = arith.constant 0 : i32
    %c0_i32_0 = arith.constant 0 : i32
    %c0_i32_1 = arith.constant 0 : i32
    return %c0_i32, %c0_i32_0 : i32, i32
  }
  func.func @transform_3(%arg0: i32, %arg1: i32) -> (i32, i32) {
    %c0_i32 = arith.constant 0 : i32
    %c0_i32_0 = arith.constant 0 : i32
    return %arg0, %c0_i32 : i32, i32
  }
}

</mosaic_0001>

<llo_original>
// kernel: tpu_custom_call.1
$region0: #{tpu_custom_call.1}
  #allocation0 [shape = 'u32[]', space=smem, size = 0x4, offset = 0x4, fixed_abs, tag = 'smem constant byte address 0x4 - core index']
  #allocation1 [shape = 'u32[144,128]{1,0:T(1,128)}', space=vmem, size = 0x12000, scoped, tag = 'internal scratch']
  #allocation2 [shape = 'f32[8,128]{1,0:T(8,128)}', space=vmem, size = 0x1000, scoped, tag = 'scratch operand']
  %s0 = inlined_call_operand.hbm [shape: f32[8,256], index: 0, kind: input, shape index: {}]
  %s1 = inlined_call_operand.hbm [shape: f32[256,128], index: 1, kind: input, shape index: {}]
  %s2 = inlined_call_operand.vmem [shape: f32[1,128], index: 2, kind: input, shape index: {}]
  %s3 = inlined_call_operand.hbm [shape: f32[8,128], index: 3, kind: output, shape index: {}]
  %s4 = sld [smem:[#allocation0]]
  $region42: #{tpu_custom_call.1} parent=0
    _
  %s6 = ssub.s32 1, %s4
  %s7 = scalar_select 0, %s6, %s4
  $region1: #{tpu_custom_call.1} parent=0
    #allocation3 [shape = 'u8[8192]{0}', space=vmem, size = 0x2000, scoped, tag = 'input window, operand 0, single buffered']
    #allocation4 [shape = 's32[1]{0}', space=sflag, size = 0x4, scoped, tag = 'scoped memory for tpu_custom_call.1']
    #allocation5 [shape = 's32[1]{0}', space=sflag, size = 0x4, scoped, tag = 'scoped memory for tpu_custom_call.1']
    #allocation6 [shape = 'u8[131072]{0}', space=vmem, size = 0x20000, scoped, tag = 'input window, operand 1, single buffered']
    #allocation7 [shape = 's32[1]{0}', space=sflag, size = 0x4, scoped, tag = 'scoped memory for tpu_custom_call.1']
    #allocation8 [shape = 'u8[4096]{0}', space=vmem, size = 0x1000, scoped, tag = 'output window, operand 0, single buffered']
    %8 = vsyncpa [#allocation4], 0
    %9 = vsyncpa [#allocation7], 0
    %10 = vsyncpa [#allocation5], 0
    // Predicated region
    $region2: #{tpu_custom_call.1} parent=1 // pred_check
      _
    $region3: #{tpu_custom_call.1} parent=1 // pred_check_branch
      %12 = sbr.rel (0) target = $region5
    $region4: #{tpu_custom_call.1} parent=1 // pred_region
      %s14 = ssub.s32 256, 256
      %15 = vsyncadd [#allocation4], %s14
      %s17 = sshll.u32 [#allocation3], 4
      %s18 = int_to_ptr.vmem [resolvable:$true] %s17
      %20 = dma.hbm_to_vmem [thread:$0]  %s0, 256, %s18, [#allocation4]
    $region5: #{tpu_custom_call.1} parent=1 // pred_fallthru
      _
    // Predicated region
    $region6: #{tpu_custom_call.1} parent=1 // pred_check
      _
    $region7: #{tpu_custom_call.1} parent=1 // pred_check_branch
      %22 = sbr.rel (0) target = $region9
    $region8: #{tpu_custom_call.1} parent=1 // pred_region
      %s24 = ssub.s32 4096, 4096
      %25 = vsyncadd [#allocation7], %s24
      %s26 = sshll.u32 [#allocation6], 4
      %s27 = int_to_ptr.vmem [resolvable:$true] %s26
      %32 = dma.hbm_to_vmem [thread:$0]  %s1, 4096, %s27, [#allocation7], 128, 128, 8
    $region9: #{tpu_custom_call.1} parent=1 // pred_fallthru
      _
    // Predicated region
    $region10: #{tpu_custom_call.1} parent=1 // pred_check
      _
    $region11: #{tpu_custom_call.1} parent=1 // pred_check_branch
      %34 = sbr.rel (0) target = $region13
    $region12: #{tpu_custom_call.1} parent=1 // pred_region
      _
    $region13: #{tpu_custom_call.1} parent=1 // pred_fallthru
      _
    // Predicated region
    $region14: #{tpu_custom_call.1} parent=1 // pred_check
      _
    $region15: #{tpu_custom_call.1} parent=1 // pred_check_branch
      %36 = sbr.rel (0) target = $region17
    $region16: #{tpu_custom_call.1} parent=1 // pred_region
      %37 = dma.done [#allocation4], 256
    $region17: #{tpu_custom_call.1} parent=1 // pred_fallthru
      _
    // Predicated region
    $region18: #{tpu_custom_call.1} parent=1 // pred_check
      _
    $region19: #{tpu_custom_call.1} parent=1 // pred_check_branch
      %39 = sbr.rel (0) target = $region21
    $region20: #{tpu_custom_call.1} parent=1 // pred_region
      %40 = dma.done [#allocation7], 4096
    $region21: #{tpu_custom_call.1} parent=1 // pred_fallthru
      _
    %v41 = vld [vmem:[#allocation3] sm:$0xff]
    %v42 = vld [vmem:[#allocation3 + $0x8] sm:$0xff]
    %v43 = vld [vmem:[#allocation6] sm:$0xff]
    %v44 = vld [vmem:[#allocation6 + $0x8] sm:$0xff]
    %v45 = vld [vmem:[#allocation6 + $0x10] sm:$0xff]
    %v46 = vld [vmem:[#allocation6 + $0x18] sm:$0xff]
    %v47 = vld [vmem:[#allocation6 + $0x20] sm:$0xff]
    %v48 = vld [vmem:[#allocation6 + $0x28] sm:$0xff]
    %v49 = vld [vmem:[#allocation6 + $0x30] sm:$0xff]
    %v50 = vld [vmem:[#allocation6 + $0x38] sm:$0xff]
    %v51 = vld [vmem:[#allocation6 + $0x40] sm:$0xff]
    %v52 = vld [vmem:[#allocation6 + $0x48] sm:$0xff]
    %v53 = vld [vmem:[#allocation6 + $0x50] sm:$0xff]
    %v54 = vld [vmem:[#allocation6 + $0x58] sm:$0xff]
    %v55 = vld [vmem:[#allocation6 + $0x60] sm:$0xff]
    %v56 = vld [vmem:[#allocation6 + $0x68] sm:$0xff]
    %v57 = vld [vmem:[#allocation6 + $0x70] sm:$0xff]
    %v58 = vld [vmem:[#allocation6 + $0x78] sm:$0xff]
    %v59 = vld [vmem:[#allocation6 + $0x80] sm:$0xff]
    %v60 = vld [vmem:[#allocation6 + $0x88] sm:$0xff]
    %v61 = vld [vmem:[#allocation6 + $0x90] sm:$0xff]
    %v62 = vld [vmem:[#allocation6 + $0x98] sm:$0xff]
    %v63 = vld [vmem:[#allocation6 + $0xa0] sm:$0xff]
    %v64 = vld [vmem:[#allocation6 + $0xa8] sm:$0xff]
    %v65 = vld [vmem:[#allocation6 + $0xb0] sm:$0xff]
    %v66 = vld [vmem:[#allocation6 + $0xb8] sm:$0xff]
    %v67 = vld [vmem:[#allocation6 + $0xc0] sm:$0xff]
    %v68 = vld [vmem:[#allocation6 + $0xc8] sm:$0xff]
    %v69 = vld [vmem:[#allocation6 + $0xd0] sm:$0xff]
    %v70 = vld [vmem:[#allocation6 + $0xd8] sm:$0xff]
    %v71 = vld [vmem:[#allocation6 + $0xe0] sm:$0xff]
    %v72 = vld [vmem:[#allocation6 + $0xe8] sm:$0xff]
    %v73 = vld [vmem:[#allocation6 + $0xf0] sm:$0xff]
    %v74 = vld [vmem:[#allocation6 + $0xf8] sm:$0xff]
    %75 = vmatprep.subr.mxu0 0.0
    %v76 = vand.u32 %v43, 4294901760
    %77 = vmatpush1.msra.mxu0 %v76
    %78 = vmatprep.subr.mxu0 0.0
    %v79 = vand.u32 %v44, 4294901760
    %80 = vmatpush1.msra.mxu0 %v79
    %81 = vmatprep.subr.mxu0 0.0
    %v82 = vand.u32 %v45, 4294901760
    %83 = vmatpush1.msra.mxu0 %v82
    %84 = vmatprep.subr.mxu0 0.0
    %v85 = vand.u32 %v46, 4294901760
    %86 = vmatpush1.msra.mxu0 %v85
    %87 = vmatprep.subr.mxu0 0.0
    %v88 = vand.u32 %v47, 4294901760
    %89 = vmatpush1.msra.mxu0 %v88
    %90 = vmatprep.subr.mxu0 0.0
    %v91 = vand.u32 %v48, 4294901760
    %92 = vmatpush1.msra.mxu0 %v91
    %93 = vmatprep.subr.mxu0 0.0
    %v94 = vand.u32 %v49, 4294901760
    %95 = vmatpush1.msra.mxu0 %v94
    %96 = vmatprep.subr.mxu0 0.0
    %v97 = vand.u32 %v50, 4294901760
    %98 = vmatpush1.msra.mxu0 %v97
    %99 = vmatprep.subr.mxu0 0.0
    %v100 = vand.u32 %v51, 4294901760
    %101 = vmatpush1.msra.mxu0 %v100
    %102 = vmatprep.subr.mxu0 0.0
    %v103 = vand.u32 %v52, 4294901760
    %104 = vmatpush1.msra.mxu0 %v103
    %105 = vmatprep.subr.mxu0 0.0
    %v106 = vand.u32 %v53, 4294901760
    %107 = vmatpush1.msra.mxu0 %v106
    %108 = vmatprep.subr.mxu0 0.0
    %v109 = vand.u32 %v54, 4294901760
    %110 = vmatpush1.msra.mxu0 %v109
    %111 = vmatprep.subr.mxu0 0.0
    %v112 = vand.u32 %v55, 4294901760
    %113 = vmatpush1.msra.mxu0 %v112
    %114 = vmatprep.subr.mxu0 0.0
    %v115 = vand.u32 %v56, 4294901760
    %116 = vmatpush1.msra.mxu0 %v115
    %117 = vmatprep.subr.mxu0 0.0
    %v118 = vand.u32 %v57, 4294901760
    %119 = vmatpush1.msra.mxu0 %v118
    %120 = vmatprep.subr.mxu0 0.0
    %v121 = vand.u32 %v58, 4294901760
    %122 = vmatpush1.msra.mxu0 %v121
    %123 = vmatprep.subr.mxu0 0.0
    %v124 = vand.u32 %v59, 4294901760
    %125 = vmatpush1.msra.mxu0 %v124
    %126 = vmatprep.subr.mxu0 0.0
    %v127 = vand.u32 %v60, 4294901760
    %128 = vmatpush1.msra.mxu0 %v127
    %129 = vmatprep.subr.mxu0 0.0
    %v130 = vand.u32 %v61, 4294901760
    %131 = vmatpush1.msra.mxu0 %v130
    %132 = vmatprep.subr.mxu0 0.0
    %v133 = vand.u32 %v62, 4294901760
    %134 = vmatpush1.msra.mxu0 %v133
    %135 = vmatprep.subr.mxu0 0.0
    %v136 = vand.u32 %v63, 4294901760
    %137 = vmatpush1.msra.mxu0 %v136
    %138 = vmatprep.subr.mxu0 0.0
    %v139 = vand.u32 %v64, 4294901760
    %140 = vmatpush1.msra.mxu0 %v139
    %141 = vmatprep.subr.mxu0 0.0
    %v142 = vand.u32 %v65, 4294901760
    %143 = vmatpush1.msra.mxu0 %v142
    %144 = vmatprep.subr.mxu0 0.0
    %v145 = vand.u32 %v66, 4294901760
    %146 = vmatpush1.msra.mxu0 %v145
    %147 = vmatprep.subr.mxu0 0.0
    %v148 = vand.u32 %v67, 4294901760
    %149 = vmatpush1.msra.mxu0 %v148
    %150 = vmatprep.subr.mxu0 0.0
    %v151 = vand.u32 %v68, 4294901760
    %152 = vmatpush1.msra.mxu0 %v151
    %153 = vmatprep.subr.mxu0 0.0
    %v154 = vand.u32 %v69, 4294901760
    %155 = vmatpush1.msra.mxu0 %v154
    %156 = vmatprep.subr.mxu0 0.0
    %v157 = vand.u32 %v70, 4294901760
    %158 = vmatpush1.msra.mxu0 %v157
    %159 = vmatprep.subr.mxu0 0.0
    %v160 = vand.u32 %v71, 4294901760
    %161 = vmatpush1.msra.mxu0 %v160
    %162 = vmatprep.subr.mxu0 0.0
    %v163 = vand.u32 %v72, 4294901760
    %164 = vmatpush1.msra.mxu0 %v163
    %165 = vmatprep.subr.mxu0 0.0
    %v166 = vand.u32 %v73, 4294901760
    %167 = vmatpush1.msra.mxu0 %v166
    %168 = vmatprep.subr.mxu0 0.0
    %v169 = vand.u32 %v74, 4294901760
    %170 = vmatpush1.msra.mxu0 %v169
    %v171 = vand.u32 %v42, 4294901760
    %v172 = vsub.f32 %v42, %v171
    %v173 = vand.u32 %v172, 4294901760
    %v174 = vsub.f32 %v172, %v173
    %v175 = vand.u32 %v174, 4294901760
    %176 = vmatprep.mubr.f32.mxu0 %v175
    %v177 = vand.u32 %v41, 4294901760
    %v178 = vsub.f32 %v41, %v177
    %v179 = vand.u32 %v178, 4294901760
    %v180 = vsub.f32 %v178, %v179
    %v181 = vand.u32 %v180, 4294901760
    %182 = vmatmul.mubr.f32.gmra.mrb[0].mxu0 %v181
    %v183 = vpop.f32.mrb[0].mxu0
    %v184 = vadd.f32 0.0, %v183
    %v185 = vpop.f32.mrb[0].mxu0
    %186 = vdwg.mxu0
    %187 = vmatprep.subr.mxu0 0.0
    %v188 = vand.u32 %v43, 4294901760
    %v189 = vsub.f32 %v43, %v188
    %v190 = vand.u32 %v189, 4294901760
    %v191 = vsub.f32 %v189, %v190
    %v192 = vand.u32 %v191, 4294901760
    %193 = vmatpush1.msra.mxu0 %v192
    %194 = vmatprep.subr.mxu0 0.0
    %v195 = vand.u32 %v44, 4294901760
    %v196 = vsub.f32 %v44, %v195
    %v197 = vand.u32 %v196, 4294901760
    %v198 = vsub.f32 %v196, %v197
    %v199 = vand.u32 %v198, 4294901760
    %200 = vmatpush1.msra.mxu0 %v199
    %201 = vmatprep.subr.mxu0 0.0
    %v202 = vand.u32 %v45, 4294901760
    %v203 = vsub.f32 %v45, %v202
    %v204 = vand.u32 %v203, 4294901760
    %v205 = vsub.f32 %v203, %v204
    %v206 = vand.u32 %v205, 4294901760
    %207 = vmatpush1.msra.mxu0 %v206
    %208 = vmatprep.subr.mxu0 0.0
    %v209 = vand.u32 %v46, 4294901760
    %v210 = vsub.f32 %v46, %v209
    %v211 = vand.u32 %v210, 4294901760
    %v212 = vsub.f32 %v210, %v211
    %v213 = vand.u32 %v212, 4294901760
    %214 = vmatpush1.msra.mxu0 %v213
    %215 = vmatprep.subr.mxu0 0.0
    %v216 = vand.u32 %v47, 4294901760
    %v217 = vsub.f32 %v47, %v216
    %v218 = vand.u32 %v217, 4294901760
    %v219 = vsub.f32 %v217, %v218
    %v220 = vand.u32 %v219, 4294901760
    %221 = vmatpush1.msra.mxu0 %v220
    %222 = vmatprep.subr.mxu0 0.0
    %v223 = vand.u32 %v48, 4294901760
    %v224 = vsub.f32 %v48, %v223
    %v225 = vand.u32 %v224, 4294901760
    %v226 = vsub.f32 %v224, %v225
    %v227 = vand.u32 %v226, 4294901760
    %228 = vmatpush1.msra.mxu0 %v227
    %229 = vmatprep.subr.mxu0 0.0
    %v230 = vand.u32 %v49, 4294901760
    %v231 = vsub.f32 %v49, %v230
    %v232 = vand.u32 %v231, 4294901760
    %v233 = vsub.f32 %v231, %v232
    %v234 = vand.u32 %v233, 4294901760
    %235 = vmatpush1.msra.mxu0 %v234
    %236 = vmatprep.subr.mxu0 0.0
    %v237 = vand.u32 %v50, 4294901760
    %v238 = vsub.f32 %v50, %v237
    %v239 = vand.u32 %v238, 4294901760
    %v240 = vsub.f32 %v238, %v239
    %v241 = vand.u32 %v240, 4294901760
    %242 = vmatpush1.msra.mxu0 %v241
    %243 = vmatprep.subr.mxu0 0.0
    %v244 = vand.u32 %v51, 4294901760
    %v245 = vsub.f32 %v51, %v244
    %v246 = vand.u32 %v245, 4294901760
    %v247 = vsub.f32 %v245, %v246
    %v248 = vand.u32 %v247, 4294901760
    %249 = vmatpush1.msra.mxu0 %v248
    %250 = vmatprep.subr.mxu0 0.0
    %v251 = vand.u32 %v52, 4294901760
    %v252 = vsub.f32 %v52, %v251
    %v253 = vand.u32 %v252, 4294901760
    %v254 = vsub.f32 %v252, %v253
    %v255 = vand.u32 %v254, 4294901760
    %256 = vmatpush1.msra.mxu0 %v255
    %257 = vmatprep.subr.mxu0 0.0
    %v258 = vand.u32 %v53, 4294901760
    %v259 = vsub.f32 %v53, %v258
    %v260 = vand.u32 %v259, 4294901760
    %v261 = vsub.f32 %v259, %v260
    %v262 = vand.u32 %v261, 4294901760
    %263 = vmatpush1.msra.mxu0 %v262
    %264 = vmatprep.subr.mxu0 0.0
    %v265 = vand.u32 %v54, 4294901760
    %v266 = vsub.f32 %v54, %v265
    %v267 = vand.u32 %v266, 4294901760
    %v268 = vsub.f32 %v266, %v267
    %v269 = vand.u32 %v268, 4294901760
    %270 = vmatpush1.msra.mxu0 %v269
    %271 = vmatprep.subr.mxu0 0.0
    %v272 = vand.u32 %v55, 4294901760
    %v273 = vsub.f32 %v55, %v272
    %v274 = vand.u32 %v273, 4294901760
    %v275 = vsub.f32 %v273, %v274
    %v276 = vand.u32 %v275, 4294901760
    %277 = vmatpush1.msra.mxu0 %v276
    %278 = vmatprep.subr.mxu0 0.0
    %v279 = vand.u32 %v56, 4294901760
    %v280 = vsub.f32 %v56, %v279
    %v281 = vand.u32 %v280, 4294901760
    %v282 = vsub.f32 %v280, %v281
    %v283 = vand.u32 %v282, 4294901760
    %284 = vmatpush1.msra.mxu0 %v283
    %285 = vmatprep.subr.mxu0 0.0
    %v286 = vand.u32 %v57, 4294901760
    %v287 = vsub.f32 %v57, %v286
    %v288 = vand.u32 %v287, 4294901760
    %v289 = vsub.f32 %v287, %v288
    %v290 = vand.u32 %v289, 4294901760
    %291 = vmatpush1.msra.mxu0 %v290
    %292 = vmatprep.subr.mxu0 0.0
    %v293 = vand.u32 %v58, 4294901760
    %v294 = vsub.f32 %v58, %v293
    %v295 = vand.u32 %v294, 4294901760
    %v296 = vsub.f32 %v294, %v295
    %v297 = vand.u32 %v296, 4294901760
    %298 = vmatpush1.msra.mxu0 %v297
    %299 = vmatprep.subr.mxu0 0.0
    %v300 = vand.u32 %v59, 4294901760
    %v301 = vsub.f32 %v59, %v300
    %v302 = vand.u32 %v301, 4294901760
    %v303 = vsub.f32 %v301, %v302
    %v304 = vand.u32 %v303, 4294901760
    %305 = vmatpush1.msra.mxu0 %v304
    %306 = vmatprep.subr.mxu0 0.0
    %v307 = vand.u32 %v60, 4294901760
    %v308 = vsub.f32 %v60, %v307
    %v309 = vand.u32 %v308, 4294901760
    %v310 = vsub.f32 %v308, %v309
    %v311 = vand.u32 %v310, 4294901760
    %312 = vmatpush1.msra.mxu0 %v311
    %313 = vmatprep.subr.mxu0 0.0
    %v314 = vand.u32 %v61, 4294901760
    %v315 = vsub.f32 %v61, %v314
    %v316 = vand.u32 %v315, 4294901760
    %v317 = vsub.f32 %v315, %v316
    %v318 = vand.u32 %v317, 4294901760
    %319 = vmatpush1.msra.mxu0 %v318
    %320 = vmatprep.subr.mxu0 0.0
    %v321 = vand.u32 %v62, 4294901760
    %v322 = vsub.f32 %v62, %v321
    %v323 = vand.u32 %v322, 4294901760
    %v324 = vsub.f32 %v322, %v323
    %v325 = vand.u32 %v324, 4294901760
    %326 = vmatpush1.msra.mxu0 %v325
    %327 = vmatprep.subr.mxu0 0.0
    %v328 = vand.u32 %v63, 4294901760
    %v329 = vsub.f32 %v63, %v328
    %v330 = vand.u32 %v329, 4294901760
    %v331 = vsub.f32 %v329, %v330
    %v332 = vand.u32 %v331, 4294901760
    %333 = vmatpush1.msra.mxu0 %v332
    %334 = vmatprep.subr.mxu0 0.0
    %v335 = vand.u32 %v64, 4294901760
    %v336 = vsub.f32 %v64, %v335
    %v337 = vand.u32 %v336, 4294901760
    %v338 = vsub.f32 %v336, %v337
    %v339 = vand.u32 %v338, 4294901760
    %340 = vmatpush1.msra.mxu0 %v339
    %341 = vmatprep.subr.mxu0 0.0
    %v342 = vand.u32 %v65, 4294901760
    %v343 = vsub.f32 %v65, %v342
    %v344 = vand.u32 %v343, 4294901760
    %v345 = vsub.f32 %v343, %v344
    %v346 = vand.u32 %v345, 4294901760
    %347 = vmatpush1.msra.mxu0 %v346
    %348 = vmatprep.subr.mxu0 0.0
    %v349 = vand.u32 %v66, 4294901760
    %v350 = vsub.f32 %v66, %v349
    %v351 = vand.u32 %v350, 4294901760
    %v352 = vsub.f32 %v350, %v351
    %v353 = vand.u32 %v352, 4294901760
    %354 = vmatpush1.msra.mxu0 %v353
    %355 = vmatprep.subr.mxu0 0.0
    %v356 = vand.u32 %v67, 4294901760
    %v357 = vsub.f32 %v67, %v356
    %v358 = vand.u32 %v357, 4294901760
    %v359 = vsub.f32 %v357, %v358
    %v360 = vand.u32 %v359, 4294901760
    %361 = vmatpush1.msra.mxu0 %v360
    %362 = vmatprep.subr.mxu0 0.0
    %v363 = vand.u32 %v68, 4294901760
    %v364 = vsub.f32 %v68, %v363
    %v365 = vand.u32 %v364, 4294901760
    %v366 = vsub.f32 %v364, %v365
    %v367 = vand.u32 %v366, 4294901760
    %368 = vmatpush1.msra.mxu0 %v367
    %369 = vmatprep.subr.mxu0 0.0
    %v370 = vand.u32 %v69, 4294901760
    %v371 = vsub.f32 %v69, %v370
    %v372 = vand.u32 %v371, 4294901760
    %v373 = vsub.f32 %v371, %v372
    %v374 = vand.u32 %v373, 4294901760
    %375 = vmatpush1.msra.mxu0 %v374
    %376 = vmatprep.subr.mxu0 0.0
    %v377 = vand.u32 %v70, 4294901760
    %v378 = vsub.f32 %v70, %v377
    %v379 = vand.u32 %v378, 4294901760
    %v380 = vsub.f32 %v378, %v379
    %v381 = vand.u32 %v380, 4294901760
    %382 = vmatpush1.msra.mxu0 %v381
    %383 = vmatprep.subr.mxu0 0.0
    %v384 = vand.u32 %v71, 4294901760
    %v385 = vsub.f32 %v71, %v384
    %v386 = vand.u32 %v385, 4294901760
    %v387 = vsub.f32 %v385, %v386
    %v388 = vand.u32 %v387, 4294901760
    %389 = vmatpush1.msra.mxu0 %v388
    %390 = vmatprep.subr.mxu0 0.0
    %v391 = vand.u32 %v72, 4294901760
    %v392 = vsub.f32 %v72, %v391
    %v393 = vand.u32 %v392, 4294901760
    %v394 = vsub.f32 %v392, %v393
    %v395 = vand.u32 %v394, 4294901760
    %396 = vmatpush1.msra.mxu0 %v395
    %397 = vmatprep.subr.mxu0 0.0
    %v398 = vand.u32 %v73, 4294901760
    %v399 = vsub.f32 %v73, %v398
    %v400 = vand.u32 %v399, 4294901760
    %v401 = vsub.f32 %v399, %v400
    %v402 = vand.u32 %v401, 4294901760
    %403 = vmatpush1.msra.mxu0 %v402
    %404 = vmatprep.subr.mxu0 0.0
    %v405 = vand.u32 %v74, 4294901760
    %v406 = vsub.f32 %v74, %v405
    %v407 = vand.u32 %v406, 4294901760
    %v408 = vsub.f32 %v406, %v407
    %v409 = vand.u32 %v408, 4294901760
    %410 = vmatpush1.msra.mxu0 %v409
    %v411 = vand.u32 %v42, 4294901760
    %412 = vmatprep.mubr.f32.mxu0 %v411
    %v413 = vand.u32 %v41, 4294901760
    %414 = vmatmul.mubr.f32.gmra.mrb[0].mxu0 %v413
    %v415 = vpop.f32.mrb[0].mxu0
    %v416 = vadd.f32 %v184, %v415
    %v417 = vpop.f32.mrb[0].mxu0
    %418 = vdwg.mxu0
    %419 = vmatprep.subr.mxu0 0.0
    %v420 = vand.u32 %v43, 4294901760
    %v421 = vsub.f32 %v43, %v420
    %422 = vmatpush1.msra.mxu0 %v421
    %423 = vmatprep.subr.mxu0 0.0
    %v424 = vand.u32 %v44, 4294901760
    %v425 = vsub.f32 %v44, %v424
    %426 = vmatpush1.msra.mxu0 %v425
    %427 = vmatprep.subr.mxu0 0.0
    %v428 = vand.u32 %v45, 4294901760
    %v429 = vsub.f32 %v45, %v428
    %430 = vmatpush1.msra.mxu0 %v429
    %431 = vmatprep.subr.mxu0 0.0
    %v432 = vand.u32 %v46, 4294901760
    %v433 = vsub.f32 %v46, %v432
    %434 = vmatpush1.msra.mxu0 %v433
    %435 = vmatprep.subr.mxu0 0.0
    %v436 = vand.u32 %v47, 4294901760
    %v437 = vsub.f32 %v47, %v436
    %438 = vmatpush1.msra.mxu0 %v437
    %439 = vmatprep.subr.mxu0 0.0
    %v440 = vand.u32 %v48, 4294901760
    %v441 = vsub.f32 %v48, %v440
    %442 = vmatpush1.msra.mxu0 %v441
    %443 = vmatprep.subr.mxu0 0.0
    %v444 = vand.u32 %v49, 4294901760
    %v445 = vsub.f32 %v49, %v444
    %446 = vmatpush1.msra.mxu0 %v445
    %447 = vmatprep.subr.mxu0 0.0
    %v448 = vand.u32 %v50, 4294901760
    %v449 = vsub.f32 %v50, %v448
    %450 = vmatpush1.msra.mxu0 %v449
    %451 = vmatprep.subr.mxu0 0.0
    %v452 = vand.u32 %v51, 4294901760
    %v453 = vsub.f32 %v51, %v452
    %454 = vmatpush1.msra.mxu0 %v453
    %455 = vmatprep.subr.mxu0 0.0
    %v456 = vand.u32 %v52, 4294901760
    %v457 = vsub.f32 %v52, %v456
    %458 = vmatpush1.msra.mxu0 %v457
    %459 = vmatprep.subr.mxu0 0.0
    %v460 = vand.u32 %v53, 4294901760
    %v461 = vsub.f32 %v53, %v460
    %462 = vmatpush1.msra.mxu0 %v461
    %463 = vmatprep.subr.mxu0 0.0
    %v464 = vand.u32 %v54, 4294901760
    %v465 = vsub.f32 %v54, %v464
    %466 = vmatpush1.msra.mxu0 %v465
    %467 = vmatprep.subr.mxu0 0.0
    %v468 = vand.u32 %v55, 4294901760
    %v469 = vsub.f32 %v55, %v468
    %470 = vmatpush1.msra.mxu0 %v469
    %471 = vmatprep.subr.mxu0 0.0
    %v472 = vand.u32 %v56, 4294901760
    %v473 = vsub.f32 %v56, %v472
    %474 = vmatpush1.msra.mxu0 %v473
    %475 = vmatprep.subr.mxu0 0.0
    %v476 = vand.u32 %v57, 4294901760
    %v477 = vsub.f32 %v57, %v476
    %478 = vmatpush1.msra.mxu0 %v477
    %479 = vmatprep.subr.mxu0 0.0
    %v480 = vand.u32 %v58, 4294901760
    %v481 = vsub.f32 %v58, %v480
    %482 = vmatpush1.msra.mxu0 %v481
    %483 = vmatprep.subr.mxu0 0.0
    %v484 = vand.u32 %v59, 4294901760
    %v485 = vsub.f32 %v59, %v484
    %486 = vmatpush1.msra.mxu0 %v485
    %487 = vmatprep.subr.mxu0 0.0
    %v488 = vand.u32 %v60, 4294901760
    %v489 = vsub.f32 %v60, %v488
    %490 = vmatpush1.msra.mxu0 %v489
    %491 = vmatprep.subr.mxu0 0.0
    %v492 = vand.u32 %v61, 4294901760
    %v493 = vsub.f32 %v61, %v492
    %494 = vmatpush1.msra.mxu0 %v493
    %495 = vmatprep.subr.mxu0 0.0
    %v496 = vand.u32 %v62, 4294901760
    %v497 = vsub.f32 %v62, %v496
    %498 = vmatpush1.msra.mxu0 %v497
    %499 = vmatprep.subr.mxu0 0.0
    %v500 = vand.u32 %v63, 4294901760
    %v501 = vsub.f32 %v63, %v500
    %502 = vmatpush1.msra.mxu0 %v501
    %503 = vmatprep.subr.mxu0 0.0
    %v504 = vand.u32 %v64, 4294901760
    %v505 = vsub.f32 %v64, %v504
    %506 = vmatpush1.msra.mxu0 %v505
    %507 = vmatprep.subr.mxu0 0.0
    %v508 = vand.u32 %v65, 4294901760
    %v509 = vsub.f32 %v65, %v508
    %510 = vmatpush1.msra.mxu0 %v509
    %511 = vmatprep.subr.mxu0 0.0
    %v512 = vand.u32 %v66, 4294901760
    %v513 = vsub.f32 %v66, %v512
    %514 = vmatpush1.msra.mxu0 %v513
    %515 = vmatprep.subr.mxu0 0.0
    %v516 = vand.u32 %v67, 4294901760
    %v517 = vsub.f32 %v67, %v516
    %518 = vmatpush1.msra.mxu0 %v517
    %519 = vmatprep.subr.mxu0 0.0
    %v520 = vand.u32 %v68, 4294901760
    %v521 = vsub.f32 %v68, %v520
    %522 = vmatpush1.msra.mxu0 %v521
    %523 = vmatprep.subr.mxu0 0.0
    %v524 = vand.u32 %v69, 4294901760
    %v525 = vsub.f32 %v69, %v524
    %526 = vmatpush1.msra.mxu0 %v525
    %527 = vmatprep.subr.mxu0 0.0
    %v528 = vand.u32 %v70, 4294901760
    %v529 = vsub.f32 %v70, %v528
    %530 = vmatpush1.msra.mxu0 %v529
    %531 = vmatprep.subr.mxu0 0.0
    %v532 = vand.u32 %v71, 4294901760
    %v533 = vsub.f32 %v71, %v532
    %534 = vmatpush1.msra.mxu0 %v533
    %535 = vmatprep.subr.mxu0 0.0
    %v536 = vand.u32 %v72, 4294901760
    %v537 = vsub.f32 %v72, %v536
    %538 = vmatpush1.msra.mxu0 %v537
    %539 = vmatprep.subr.mxu0 0.0
    %v540 = vand.u32 %v73, 4294901760
    %v541 = vsub.f32 %v73, %v540
    %542 = vmatpush1.msra.mxu0 %v541
    %543 = vmatprep.subr.mxu0 0.0
    %v544 = vand.u32 %v74, 4294901760
    %v545 = vsub.f32 %v74, %v544
    %546 = vmatpush1.msra.mxu0 %v545
    %v547 = vand.u32 %v42, 4294901760
    %v548 = vsub.f32 %v42, %v547
    %549 = vmatprep.mubr.f32.mxu0 %v548
    %v550 = vand.u32 %v41, 4294901760
    %v551 = vsub.f32 %v41, %v550
    %552 = vmatmul.mubr.f32.gmra.mrb[0].mxu0 %v551
    %v553 = vpop.f32.mrb[0].mxu0
    %v554 = vadd.f32 %v416, %v553
    %v555 = vpop.f32.mrb[0].mxu0
    %556 = vdwg.mxu0
    %557 = vmatprep.subr.mxu0 0.0
    %v558 = vand.u32 %v43, 4294901760
    %559 = vmatpush1.msra.mxu0 %v558
    %560 = vmatprep.subr.mxu0 0.0
    %v561 = vand.u32 %v44, 4294901760
    %562 = vmatpush1.msra.mxu0 %v561
    %563 = vmatprep.subr.mxu0 0.0
    %v564 = vand.u32 %v45, 4294901760
    %565 = vmatpush1.msra.mxu0 %v564
    %566 = vmatprep.subr.mxu0 0.0
    %v567 = vand.u32 %v46, 4294901760
    %568 = vmatpush1.msra.mxu0 %v567
    %569 = vmatprep.subr.mxu0 0.0
    %v570 = vand.u32 %v47, 4294901760
    %571 = vmatpush1.msra.mxu0 %v570
    %572 = vmatprep.subr.mxu0 0.0
    %v573 = vand.u32 %v48, 4294901760
    %574 = vmatpush1.msra.mxu0 %v573
    %575 = vmatprep.subr.mxu0 0.0
    %v576 = vand.u32 %v49, 4294901760
    %577 = vmatpush1.msra.mxu0 %v576
    %578 = vmatprep.subr.mxu0 0.0
    %v579 = vand.u32 %v50, 4294901760
    %580 = vmatpush1.msra.mxu0 %v579
    %581 = vmatprep.subr.mxu0 0.0
    %v582 = vand.u32 %v51, 4294901760
    %583 = vmatpush1.msra.mxu0 %v582
    %584 = vmatprep.subr.mxu0 0.0
    %v585 = vand.u32 %v52, 4294901760
    %586 = vmatpush1.msra.mxu0 %v585
    %587 = vmatprep.subr.mxu0 0.0
    %v588 = vand.u32 %v53, 4294901760
    %589 = vmatpush1.msra.mxu0 %v588
    %590 = vmatprep.subr.mxu0 0.0
    %v591 = vand.u32 %v54, 4294901760
    %592 = vmatpush1.msra.mxu0 %v591
    %593 = vmatprep.subr.mxu0 0.0
    %v594 = vand.u32 %v55, 4294901760
    %595 = vmatpush1.msra.mxu0 %v594
    %596 = vmatprep.subr.mxu0 0.0
    %v597 = vand.u32 %v56, 4294901760
    %598 = vmatpush1.msra.mxu0 %v597
    %599 = vmatprep.subr.mxu0 0.0
    %v600 = vand.u32 %v57, 4294901760
    %601 = vmatpush1.msra.mxu0 %v600
    %602 = vmatprep.subr.mxu0 0.0
    %v603 = vand.u32 %v58, 4294901760
    %604 = vmatpush1.msra.mxu0 %v603
    %605 = vmatprep.subr.mxu0 0.0
    %v606 = vand.u32 %v59, 4294901760
    %607 = vmatpush1.msra.mxu0 %v606
    %608 = vmatprep.subr.mxu0 0.0
    %v609 = vand.u32 %v60, 4294901760
    %610 = vmatpush1.msra.mxu0 %v609
    %611 = vmatprep.subr.mxu0 0.0
    %v612 = vand.u32 %v61, 4294901760
    %613 = vmatpush1.msra.mxu0 %v612
    %614 = vmatprep.subr.mxu0 0.0
    %v615 = vand.u32 %v62, 4294901760
    %616 = vmatpush1.msra.mxu0 %v615
    %617 = vmatprep.subr.mxu0 0.0
    %v618 = vand.u32 %v63, 4294901760
    %619 = vmatpush1.msra.mxu0 %v618
    %620 = vmatprep.subr.mxu0 0.0
    %v621 = vand.u32 %v64, 4294901760
    %622 = vmatpush1.msra.mxu0 %v621
    %623 = vmatprep.subr.mxu0 0.0
    %v624 = vand.u32 %v65, 4294901760
    %625 = vmatpush1.msra.mxu0 %v624
    %626 = vmatprep.subr.mxu0 0.0
    %v627 = vand.u32 %v66, 4294901760
    %628 = vmatpush1.msra.mxu0 %v627
    %629 = vmatprep.subr.mxu0 0.0
    %v630 = vand.u32 %v67, 4294901760
    %631 = vmatpush1.msra.mxu0 %v630
    %632 = vmatprep.subr.mxu0 0.0
    %v633 = vand.u32 %v68, 4294901760
    %634 = vmatpush1.msra.mxu0 %v633
    %635 = vmatprep.subr.mxu0 0.0
    %v636 = vand.u32 %v69, 4294901760
    %637 = vmatpush1.msra.mxu0 %v636
    %638 = vmatprep.subr.mxu0 0.0
    %v639 = vand.u32 %v70, 4294901760
    %640 = vmatpush1.msra.mxu0 %v639
    %641 = vmatprep.subr.mxu0 0.0
    %v642 = vand.u32 %v71, 4294901760
    %643 = vmatpush1.msra.mxu0 %v642
    %644 = vmatprep.subr.mxu0 0.0
    %v645 = vand.u32 %v72, 4294901760
    %646 = vmatpush1.msra.mxu0 %v645
    %647 = vmatprep.subr.mxu0 0.0
    %v648 = vand.u32 %v73, 4294901760
    %649 = vmatpush1.msra.mxu0 %v648
    %650 = vmatprep.subr.mxu0 0.0
    %v651 = vand.u32 %v74, 4294901760
    %652 = vmatpush1.msra.mxu0 %v651
    %v653 = vand.u32 %v42, 4294901760
    %v654 = vsub.f32 %v42, %v653
    %v655 = vand.u32 %v654, 4294901760
    %656 = vmatprep.mubr.f32.mxu0 %v655
    %v657 = vand.u32 %v41, 4294901760
    %v658 = vsub.f32 %v41, %v657
    %v659 = vand.u32 %v658, 4294901760
    %660 = vmatmul.mubr.f32.gmra.mrb[0].mxu0 %v659
    %v661 = vpop.f32.mrb[0].mxu0
    %v662 = vadd.f32 %v554, %v661
    %v663 = vpop.f32.mrb[0].mxu0
    %664 = vdwg.mxu0
    %665 = vmatprep.subr.mxu0 0.0
    %v666 = vand.u32 %v43, 4294901760
    %v667 = vsub.f32 %v43, %v666
    %v668 = vand.u32 %v667, 4294901760
    %669 = vmatpush1.msra.mxu0 %v668
    %670 = vmatprep.subr.mxu0 0.0
    %v671 = vand.u32 %v44, 4294901760
    %v672 = vsub.f32 %v44, %v671
    %v673 = vand.u32 %v672, 4294901760
    %674 = vmatpush1.msra.mxu0 %v673
    %675 = vmatprep.subr.mxu0 0.0
    %v676 = vand.u32 %v45, 4294901760
    %v677 = vsub.f32 %v45, %v676
    %v678 = vand.u32 %v677, 4294901760
    %679 = vmatpush1.msra.mxu0 %v678
    %680 = vmatprep.subr.mxu0 0.0
    %v681 = vand.u32 %v46, 4294901760
    %v682 = vsub.f32 %v46, %v681
    %v683 = vand.u32 %v682, 4294901760
    %684 = vmatpush1.msra.mxu0 %v683
    %685 = vmatprep.subr.mxu0 0.0
    %v686 = vand.u32 %v47, 4294901760
    %v687 = vsub.f32 %v47, %v686
    %v688 = vand.u32 %v687, 4294901760
    %689 = vmatpush1.msra.mxu0 %v688
    %690 = vmatprep.subr.mxu0 0.0
    %v691 = vand.u32 %v48, 4294901760
    %v692 = vsub.f32 %v48, %v691
    %v693 = vand.u32 %v692, 4294901760
    %694 = vmatpush1.msra.mxu0 %v693
    %695 = vmatprep.subr.mxu0 0.0
    %v696 = vand.u32 %v49, 4294901760
    %v697 = vsub.f32 %v49, %v696
    %v698 = vand.u32 %v697, 4294901760
    %699 = vmatpush1.msra.mxu0 %v698
    %700 = vmatprep.subr.mxu0 0.0
    %v701 = vand.u32 %v50, 4294901760
    %v702 = vsub.f32 %v50, %v701
    %v703 = vand.u32 %v702, 4294901760
    %704 = vmatpush1.msra.mxu0 %v703
    %705 = vmatprep.subr.mxu0 0.0
    %v706 = vand.u32 %v51, 4294901760
    %v707 = vsub.f32 %v51, %v706
    %v708 = vand.u32 %v707, 4294901760
    %709 = vmatpush1.msra.mxu0 %v708
    %710 = vmatprep.subr.mxu0 0.0
    %v711 = vand.u32 %v52, 4294901760
    %v712 = vsub.f32 %v52, %v711
    %v713 = vand.u32 %v712, 4294901760
    %714 = vmatpush1.msra.mxu0 %v713
    %715 = vmatprep.subr.mxu0 0.0
    %v716 = vand.u32 %v53, 4294901760
    %v717 = vsub.f32 %v53, %v716
    %v718 = vand.u32 %v717, 4294901760
    %719 = vmatpush1.msra.mxu0 %v718
    %720 = vmatprep.subr.mxu0 0.0
    %v721 = vand.u32 %v54, 4294901760
    %v722 = vsub.f32 %v54, %v721
    %v723 = vand.u32 %v722, 4294901760
    %724 = vmatpush1.msra.mxu0 %v723
    %725 = vmatprep.subr.mxu0 0.0
    %v726 = vand.u32 %v55, 4294901760
    %v727 = vsub.f32 %v55, %v726
    %v728 = vand.u32 %v727, 4294901760
    %729 = vmatpush1.msra.mxu0 %v728
    %730 = vmatprep.subr.mxu0 0.0
    %v731 = vand.u32 %v56, 4294901760
    %v732 = vsub.f32 %v56, %v731
    %v733 = vand.u32 %v732, 4294901760
    %734 = vmatpush1.msra.mxu0 %v733
    %735 = vmatprep.subr.mxu0 0.0
    %v736 = vand.u32 %v57, 4294901760
    %v737 = vsub.f32 %v57, %v736
    %v738 = vand.u32 %v737, 4294901760
    %739 = vmatpush1.msra.mxu0 %v738
    %740 = vmatprep.subr.mxu0 0.0
    %v741 = vand.u32 %v58, 4294901760
    %v742 = vsub.f32 %v58, %v741
    %v743 = vand.u32 %v742, 4294901760
    %744 = vmatpush1.msra.mxu0 %v743
    %745 = vmatprep.subr.mxu0 0.0
    %v746 = vand.u32 %v59, 4294901760
    %v747 = vsub.f32 %v59, %v746
    %v748 = vand.u32 %v747, 4294901760
    %749 = vmatpush1.msra.mxu0 %v748
    %750 = vmatprep.subr.mxu0 0.0
    %v751 = vand.u32 %v60, 4294901760
    %v752 = vsub.f32 %v60, %v751
    %v753 = vand.u32 %v752, 4294901760
    %754 = vmatpush1.msra.mxu0 %v753
    %755 = vmatprep.subr.mxu0 0.0
    %v756 = vand.u32 %v61, 4294901760
    %v757 = vsub.f32 %v61, %v756
    %v758 = vand.u32 %v757, 4294901760
    %759 = vmatpush1.msra.mxu0 %v758
    %760 = vmatprep.subr.mxu0 0.0
    %v761 = vand.u32 %v62, 4294901760
    %v762 = vsub.f32 %v62, %v761
    %v763 = vand.u32 %v762, 4294901760
    %764 = vmatpush1.msra.mxu0 %v763
    %765 = vmatprep.subr.mxu0 0.0
    %v766 = vand.u32 %v63, 4294901760
    %v767 = vsub.f32 %v63, %v766
    %v768 = vand.u32 %v767, 4294901760
    %769 = vmatpush1.msra.mxu0 %v768
    %770 = vmatprep.subr.mxu0 0.0
    %v771 = vand.u32 %v64, 4294901760
    %v772 = vsub.f32 %v64, %v771
    %v773 = vand.u32 %v772, 4294901760
    %774 = vmatpush1.msra.mxu0 %v773
    %775 = vmatprep.subr.mxu0 0.0
    %v776 = vand.u32 %v65, 4294901760
    %v777 = vsub.f32 %v65, %v776
    %v778 = vand.u32 %v777, 4294901760
    %779 = vmatpush1.msra.mxu0 %v778
    %780 = vmatprep.subr.mxu0 0.0
    %v781 = vand.u32 %v66, 4294901760
    %v782 = vsub.f32 %v66, %v781
    %v783 = vand.u32 %v782, 4294901760
    %784 = vmatpush1.msra.mxu0 %v783
    %785 = vmatprep.subr.mxu0 0.0
    %v786 = vand.u32 %v67, 4294901760
    %v787 = vsub.f32 %v67, %v786
    %v788 = vand.u32 %v787, 4294901760
    %789 = vmatpush1.msra.mxu0 %v788
    %790 = vmatprep.subr.mxu0 0.0
    %v791 = vand.u32 %v68, 4294901760
    %v792 = vsub.f32 %v68, %v791
    %v793 = vand.u32 %v792, 4294901760
    %794 = vmatpush1.msra.mxu0 %v793
    %795 = vmatprep.subr.mxu0 0.0
    %v796 = vand.u32 %v69, 4294901760
    %v797 = vsub.f32 %v69, %v796
    %v798 = vand.u32 %v797, 4294901760
    %799 = vmatpush1.msra.mxu0 %v798
    %800 = vmatprep.subr.mxu0 0.0
    %v801 = vand.u32 %v70, 4294901760
    %v802 = vsub.f32 %v70, %v801
    %v803 = vand.u32 %v802, 4294901760
    %804 = vmatpush1.msra.mxu0 %v803
    %805 = vmatprep.subr.mxu0 0.0
    %v806 = vand.u32 %v71, 4294901760
    %v807 = vsub.f32 %v71, %v806
    %v808 = vand.u32 %v807, 4294901760
    %809 = vmatpush1.msra.mxu0 %v808
    %810 = vmatprep.subr.mxu0 0.0
    %v811 = vand.u32 %v72, 4294901760
    %v812 = vsub.f32 %v72, %v811
    %v813 = vand.u32 %v812, 4294901760
    %814 = vmatpush1.msra.mxu0 %v813
    %815 = vmatprep.subr.mxu0 0.0
    %v816 = vand.u32 %v73, 4294901760
    %v817 = vsub.f32 %v73, %v816
    %v818 = vand.u32 %v817, 4294901760
    %819 = vmatpush1.msra.mxu0 %v818
    %820 = vmatprep.subr.mxu0 0.0
    %v821 = vand.u32 %v74, 4294901760
    %v822 = vsub.f32 %v74, %v821
    %v823 = vand.u32 %v822, 4294901760
    %824 = vmatpush1.msra.mxu0 %v823
    %v825 = vand.u32 %v42, 4294901760
    %826 = vmatprep.mubr.f32.mxu0 %v825
    %v827 = vand.u32 %v41, 4294901760
    %828 = vmatmul.mubr.f32.gmra.mrb[0].mxu0 %v827
    %v829 = vpop.f32.mrb[0].mxu0
    %v830 = vadd.f32 %v662, %v829
    %v831 = vpop.f32.mrb[0].mxu0
    %832 = vdwg.mxu0
    %833 = vmatprep.subr.mxu0 0.0
    %v834 = vand.u32 %v43, 4294901760
    %835 = vmatpush1.msra.mxu0 %v834
    %836 = vmatprep.subr.mxu0 0.0
    %v837 = vand.u32 %v44, 4294901760
    %838 = vmatpush1.msra.mxu0 %v837
    %839 = vmatprep.subr.mxu0 0.0
    %v840 = vand.u32 %v45, 4294901760
    %841 = vmatpush1.msra.mxu0 %v840
    %842 = vmatprep.subr.mxu0 0.0
    %v843 = vand.u32 %v46, 4294901760
    %844 = vmatpush1.msra.mxu0 %v843
    %845 = vmatprep.subr.mxu0 0.0
    %v846 = vand.u32 %v47, 4294901760
    %847 = vmatpush1.msra.mxu0 %v846
    %848 = vmatprep.subr.mxu0 0.0
    %v849 = vand.u32 %v48, 4294901760
    %850 = vmatpush1.msra.mxu0 %v849
    %851 = vmatprep.subr.mxu0 0.0
    %v852 = vand.u32 %v49, 4294901760
    %853 = vmatpush1.msra.mxu0 %v852
    %854 = vmatprep.subr.mxu0 0.0
    %v855 = vand.u32 %v50, 4294901760
    %856 = vmatpush1.msra.mxu0 %v855
    %857 = vmatprep.subr.mxu0 0.0
    %v858 = vand.u32 %v51, 4294901760
    %859 = vmatpush1.msra.mxu0 %v858
    %860 = vmatprep.subr.mxu0 0.0
    %v861 = vand.u32 %v52, 4294901760
    %862 = vmatpush1.msra.mxu0 %v861
    %863 = vmatprep.subr.mxu0 0.0
    %v864 = vand.u32 %v53, 4294901760
    %865 = vmatpush1.msra.mxu0 %v864
    %866 = vmatprep.subr.mxu0 0.0
    %v867 = vand.u32 %v54, 4294901760
    %868 = vmatpush1.msra.mxu0 %v867
    %869 = vmatprep.subr.mxu0 0.0
    %v870 = vand.u32 %v55, 4294901760
    %871 = vmatpush1.msra.mxu0 %v870
    %872 = vmatprep.subr.mxu0 0.0
    %v873 = vand.u32 %v56, 4294901760
    %874 = vmatpush1.msra.mxu0 %v873
    %875 = vmatprep.subr.mxu0 0.0
    %v876 = vand.u32 %v57, 4294901760
    %877 = vmatpush1.msra.mxu0 %v876
    %878 = vmatprep.subr.mxu0 0.0
    %v879 = vand.u32 %v58, 4294901760
    %880 = vmatpush1.msra.mxu0 %v879
    %881 = vmatprep.subr.mxu0 0.0
    %v882 = vand.u32 %v59, 4294901760
    %883 = vmatpush1.msra.mxu0 %v882
    %884 = vmatprep.subr.mxu0 0.0
    %v885 = vand.u32 %v60, 4294901760
    %886 = vmatpush1.msra.mxu0 %v885
    %887 = vmatprep.subr.mxu0 0.0
    %v888 = vand.u32 %v61, 4294901760
    %889 = vmatpush1.msra.mxu0 %v888
    %890 = vmatprep.subr.mxu0 0.0
    %v891 = vand.u32 %v62, 4294901760
    %892 = vmatpush1.msra.mxu0 %v891
    %893 = vmatprep.subr.mxu0 0.0
    %v894 = vand.u32 %v63, 4294901760
    %895 = vmatpush1.msra.mxu0 %v894
    %896 = vmatprep.subr.mxu0 0.0
    %v897 = vand.u32 %v64, 4294901760
    %898 = vmatpush1.msra.mxu0 %v897
    %899 = vmatprep.subr.mxu0 0.0
    %v900 = vand.u32 %v65, 4294901760
    %901 = vmatpush1.msra.mxu0 %v900
    %902 = vmatprep.subr.mxu0 0.0
    %v903 = vand.u32 %v66, 4294901760
    %904 = vmatpush1.msra.mxu0 %v903
    %905 = vmatprep.subr.mxu0 0.0
    %v906 = vand.u32 %v67, 4294901760
    %907 = vmatpush1.msra.mxu0 %v906
    %908 = vmatprep.subr.mxu0 0.0
    %v909 = vand.u32 %v68, 4294901760
    %910 = vmatpush1.msra.mxu0 %v909
    %911 = vmatprep.subr.mxu0 0.0
    %v912 = vand.u32 %v69, 4294901760
    %913 = vmatpush1.msra.mxu0 %v912
    %914 = vmatprep.subr.mxu0 0.0
    %v915 = vand.u32 %v70, 4294901760
    %916 = vmatpush1.msra.mxu0 %v915
    %917 = vmatprep.subr.mxu0 0.0
    %v918 = vand.u32 %v71, 4294901760
    %919 = vmatpush1.msra.mxu0 %v918
    %920 = vmatprep.subr.mxu0 0.0
    %v921 = vand.u32 %v72, 4294901760
    %922 = vmatpush1.msra.mxu0 %v921
    %923 = vmatprep.subr.mxu0 0.0
    %v924 = vand.u32 %v73, 4294901760
    %925 = vmatpush1.msra.mxu0 %v924
    %926 = vmatprep.subr.mxu0 0.0
    %v927 = vand.u32 %v74, 4294901760
    %928 = vmatpush1.msra.mxu0 %v927
    %v929 = vand.u32 %v42, 4294901760
    %930 = vmatprep.mubr.f32.mxu0 %v929
    %v931 = vand.u32 %v41, 4294901760
    %932 = vmatmul.mubr.f32.gmra.mrb[0].mxu0 %v931
    %v933 = vpop.f32.mrb[0].mxu0
    %v934 = vadd.f32 %v830, %v933
    %v935 = vpop.f32.mrb[0].mxu0
    %936 = vdwg.mxu0
    %p937 = scmp.eq.s32.totalorder 0, 0
    // Predicated region
    $region22: #{tpu_custom_call.1} parent=1 // pred_check
      %p938 = pneg %p937
    $region23: #{tpu_custom_call.1} parent=1 // pred_check_branch
      %940 = sbr.rel (%p938) target = $region25
    $region24: #{tpu_custom_call.1} parent=1 // pred_region
      %941 = vst [vmem:[#allocation2] sm:$0xff] %v934
    $region25: #{tpu_custom_call.1} parent=1 // pred_fallthru
      _
    %p942 = scmp.gt.s32.totalorder 0, 0
    // Predicated region
    $region26: #{tpu_custom_call.1} parent=1 // pred_check
      %p943 = pneg %p942
    $region27: #{tpu_custom_call.1} parent=1 // pred_check_branch
      %945 = sbr.rel (%p943) target = $region29
    $region28: #{tpu_custom_call.1} parent=1 // pred_region
      %v946 = vld [vmem:[#allocation2] sm:$0xff]
      %v947 = vadd.f32 %v946, %v934
      %948 = vst [vmem:[#allocation2] sm:$0xff] %v947
    $region29: #{tpu_custom_call.1} parent=1 // pred_fallthru
      _
    // Predicated region
    $region30: #{tpu_custom_call.1} parent=1 // pred_check
      %p949 = pneg %p937
    $region31: #{tpu_custom_call.1} parent=1 // pred_check_branch
      %951 = sbr.rel (%p949) target = $region33
    $region32: #{tpu_custom_call.1} parent=1 // pred_region
      %v952 = vld [vmem:[#allocation2] sm:$0xff]
      %v953 = vld [vmem:[%s2] sm:$0x1]
      %v955 = vlaneseq
      %v956 = vshrl.u32 %v955, 7
      %v957 = vsub.s32 0, %v956
      %v958 = vrot.slane %v953, %v957
      %v960 = vadd.f32 %v952, %v958
      %961 = vmax.xlane.f32.xlu0 %v960
      %v962 = vpop.xlane.xlu0 %961
      %v963 = vsub.f32 %v960, %v962
      %v964 = vmul.f32 %v963, 1.442695
      %v965 = vpow.pop %v964
      %966 = vadd.xlane.f32.xlu0 %v965
      %v967 = vpop.xlane.xlu0 %966
      %v968 = vlog2.pop %v967
      %v969 = vmul.f32 %v968, 0.6931472
      %v970 = vsub.f32 %v963, %v969
      %971 = vst [vmem:[#allocation8] sm:$0xff] %v970
    $region33: #{tpu_custom_call.1} parent=1 // pred_fallthru
      _
    // Predicated region
    $region34: #{tpu_custom_call.1} parent=1 // pred_check
      _
    $region35: #{tpu_custom_call.1} parent=1 // pred_check_branch
      %973 = sbr.rel (0) target = $region37
    $region36: #{tpu_custom_call.1} parent=1 // pred_region
      %s975 = ssub.s32 128, 128
      %976 = vsyncadd [#allocation5], %s975
      %s978 = sshll.u32 [#allocation8], 4
      %s979 = int_to_ptr.vmem [resolvable:$true] %s978
      %981 = dma.vmem_to_hbm [thread:$0]  %s979, 128, %s3, [#allocation5]
    $region37: #{tpu_custom_call.1} parent=1 // pred_fallthru
      _
    // Predicated region
    $region38: #{tpu_custom_call.1} parent=1 // pred_check
      _
    $region39: #{tpu_custom_call.1} parent=1 // pred_check_branch
      %983 = sbr.rel (0) target = $region41
    $region40: #{tpu_custom_call.1} parent=1 // pred_region
      %984 = dma.done [#allocation5], 128
    $region41: #{tpu_custom_call.1} parent=1 // pred_fallthru
      _
    %985 = vsyncpa [#allocation4], 1
    %986 = vsyncpa [#allocation7], 1
    %987 = vsyncpa [#allocation5], 1

// kernel: tpu_custom_call.1
$region0: #{tpu_custom_call.1}
  #allocation0 [shape = 'u32[]', space=smem, size = 0x4, offset = 0x4, fixed_abs, tag = 'smem constant byte address 0x4 - core index']
  #allocation1 [shape = 'u32[144,128]{1,0:T(1,128)}', space=vmem, size = 0x12000, scoped, tag = 'internal scratch']
  #allocation2 [shape = 'f32[8,128]{1,0:T(8,128)}', space=vmem, size = 0x1000, scoped, tag = 'scratch operand']
  %s0 = inlined_call_operand.hbm [shape: f32[8,256], index: 0, kind: input, shape index: {}]
  %s1 = inlined_call_operand.hbm [shape: f32[256,128], index: 1, kind: input, shape index: {}]
  %s2 = inlined_call_operand.vmem [shape: f32[1,128], index: 2, kind: input, shape index: {}]
  %s3 = inlined_call_operand.hbm [shape: f32[8,128], index: 3, kind: output, shape index: {}]
  %s4 = sld [smem:[#allocation0]]
  $region42: #{tpu_custom_call.1} parent=0
    _
  %s6 = ssub.s32 1, %s4
  %s7 = scalar_select 0, %s6, %s4
  $region1: #{tpu_custom_call.1} parent=0
    #allocation3 [shape = 'u8[8192]{0}', space=vmem, size = 0x2000, scoped, tag = 'input window, operand 0, single buffered']
    #allocation4 [shape = 's32[1]{0}', space=sflag, size = 0x4, scoped, tag = 'scoped memory for tpu_custom_call.1']
    #allocation5 [shape = 's32[1]{0}', space=sflag, size = 0x4, scoped, tag = 'scoped memory for tpu_custom_call.1']
    #allocation6 [shape = 'u8[131072]{0}', space=vmem, size = 0x20000, scoped, tag = 'input window, operand 1, single buffered']
    #allocation7 [shape = 's32[1]{0}', space=sflag, size = 0x4, scoped, tag = 'scoped memory for tpu_custom_call.1']
    #allocation8 [shape = 'u8[4096]{0}', space=vmem, size = 0x1000, scoped, tag = 'output window, operand 0, single buffered']
    %8 = vsyncpa [#allocation4], 0
    %9 = vsyncpa [#allocation7], 0
    %10 = vsyncpa [#allocation5], 0
    // Predicated region
    $region2: #{tpu_custom_call.1} parent=1 // pred_check
      _
    $region3: #{tpu_custom_call.1} parent=1 // pred_check_branch
      %12 = sbr.rel (0) target = $region5
    $region4: #{tpu_custom_call.1} parent=1 // pred_region
      %s14 = ssub.s32 256, 256
      %15 = vsyncadd [#allocation4], %s14
      %s17 = sshll.u32 [#allocation3], 4
      %s18 = int_to_ptr.vmem [resolvable:$true] %s17
      %20 = dma.hbm_to_vmem [thread:$0]  %s0, 256, %s18, [#allocation4]
    $region5: #{tpu_custom_call.1} parent=1 // pred_fallthru
      _
    // Predicated region
    $region6: #{tpu_custom_call.1} parent=1 // pred_check
      _
    $region7: #{tpu_custom_call.1} parent=1 // pred_check_branch
      %22 = sbr.rel (0) target = $region9
    $region8: #{tpu_custom_call.1} parent=1 // pred_region
      %s24 = ssub.s32 4096, 4096
      %25 = vsyncadd [#allocation7], %s24
      %s26 = sshll.u32 [#allocation6], 4
      %s27 = int_to_ptr.vmem [resolvable:$true] %s26
      %32 = dma.hbm_to_vmem [thread:$0]  %s1, 4096, %s27, [#allocation7], 128, 128, 8
    $region9: #{tpu_custom_call.1} parent=1 // pred_fallthru
      _
    // Predicated region
    $region10: #{tpu_custom_call.1} parent=1 // pred_check
      _
    $region11: #{tpu_custom_call.1} parent=1 // pred_check_branch
      %34 = sbr.rel (0) target = $region13
    $region12: #{tpu_custom_call.1} parent=1 // pred_region
      _
    $region13: #{tpu_custom_call.1} parent=1 // pred_fallthru
      _
    // Predicated region
    $region14: #{tpu_custom_call.1} parent=1 // pred_check
      _
    $region15: #{tpu_custom_call.1} parent=1 // pred_check_branch
      %36 = sbr.rel (0) target = $region17
    $region16: #{tpu_custom_call.1} parent=1 // pred_region
      %37 = dma.done [#allocation4], 256
    $region17: #{tpu_custom_call.1} parent=1 // pred_fallthru
      _
    // Predicated region
    $region18: #{tpu_custom_call.1} parent=1 // pred_check
      _
    $region19: #{tpu_custom_call.1} parent=1 // pred_check_branch
      %39 = sbr.rel (0) target = $region21
    $region20: #{tpu_custom_call.1} parent=1 // pred_region
      %40 = dma.done [#allocation7], 4096
    $region21: #{tpu_custom_call.1} parent=1 // pred_fallthru
      _
    %v41 = vld [vmem:[#allocation3] sm:$0xff]
    %v42 = vld [vmem:[#allocation3 + $0x8] sm:$0xff]
    %v43 = vld [vmem:[#allocation6] sm:$0xff]
    %v44 = vld [vmem:[#allocation6 + $0x8] sm:$0xff]
    %v45 = vld [vmem:[#allocation6 + $0x10] sm:$0xff]
    %v46 = vld [vmem:[#allocation6 + $0x18] sm:$0xff]
    %v47 = vld [vmem:[#allocation6 + $0x20] sm:$0xff]
    %v48 = vld [vmem:[#allocation6 + $0x28] sm:$0xff]
    %v49 = vld [vmem:[#allocation6 + $0x30] sm:$0xff]
    %v50 = vld [vmem:[#allocation6 + $0x38] sm:$0xff]
    %v51 = vld [vmem:[#allocation6 + $0x40] sm:$0xff]
    %v52 = vld [vmem:[#allocation6 + $0x48] sm:$0xff]
    %v53 = vld [vmem:[#allocation6 + $0x50] sm:$0xff]
    %v54 = vld [vmem:[#allocation6 + $0x58] sm:$0xff]
    %v55 = vld [vmem:[#allocation6 + $0x60] sm:$0xff]
    %v56 = vld [vmem:[#allocation6 + $0x68] sm:$0xff]
    %v57 = vld [vmem:[#allocation6 + $0x70] sm:$0xff]
    %v58 = vld [vmem:[#allocation6 + $0x78] sm:$0xff]
    %v59 = vld [vmem:[#allocation6 + $0x80] sm:$0xff]
    %v60 = vld [vmem:[#allocation6 + $0x88] sm:$0xff]
    %v61 = vld [vmem:[#allocation6 + $0x90] sm:$0xff]
    %v62 = vld [vmem:[#allocation6 + $0x98] sm:$0xff]
    %v63 = vld [vmem:[#allocation6 + $0xa0] sm:$0xff]
    %v64 = vld [vmem:[#allocation6 + $0xa8] sm:$0xff]
    %v65 = vld [vmem:[#allocation6 + $0xb0] sm:$0xff]
    %v66 = vld [vmem:[#allocation6 + $0xb8] sm:$0xff]
    %v67 = vld [vmem:[#allocation6 + $0xc0] sm:$0xff]
    %v68 = vld [vmem:[#allocation6 + $0xc8] sm:$0xff]
    %v69 = vld [vmem:[#allocation6 + $0xd0] sm:$0xff]
    %v70 = vld [vmem:[#allocation6 + $0xd8] sm:$0xff]
    %v71 = vld [vmem:[#allocation6 + $0xe0] sm:$0xff]
    %v72 = vld [vmem:[#allocation6 + $0xe8] sm:$0xff]
    %v73 = vld [vmem:[#allocation6 + $0xf0] sm:$0xff]
    %v74 = vld [vmem:[#allocation6 + $0xf8] sm:$0xff]
    %75 = vmatprep.subr.mxu0 0.0
    %v76 = vand.u32 %v43, 4294901760
    %77 = vmatpush1.msra.mxu0 %v76
    %78 = vmatprep.subr.mxu0 0.0
    %v79 = vand.u32 %v44, 4294901760
    %80 = vmatpush1.msra.mxu0 %v79
    %81 = vmatprep.subr.mxu0 0.0
    %v82 = vand.u32 %v45, 4294901760
    %83 = vmatpush1.msra.mxu0 %v82
    %84 = vmatprep.subr.mxu0 0.0
    %v85 = vand.u32 %v46, 4294901760
    %86 = vmatpush1.msra.mxu0 %v85
    %87 = vmatprep.subr.mxu0 0.0
    %v88 = vand.u32 %v47, 4294901760
    %89 = vmatpush1.msra.mxu0 %v88
    %90 = vmatprep.subr.mxu0 0.0
    %v91 = vand.u32 %v48, 4294901760
    %92 = vmatpush1.msra.mxu0 %v91
    %93 = vmatprep.subr.mxu0 0.0
    %v94 = vand.u32 %v49, 4294901760
    %95 = vmatpush1.msra.mxu0 %v94
    %96 = vmatprep.subr.mxu0 0.0
    %v97 = vand.u32 %v50, 4294901760
    %98 = vmatpush1.msra.mxu0 %v97
    %99 = vmatprep.subr.mxu0 0.0
    %v100 = vand.u32 %v51, 4294901760
    %101 = vmatpush1.msra.mxu0 %v100
    %102 = vmatprep.subr.mxu0 0.0
    %v103 = vand.u32 %v52, 4294901760
    %104 = vmatpush1.msra.mxu0 %v103
    %105 = vmatprep.subr.mxu0 0.0
    %v106 = vand.u32 %v53, 4294901760
    %107 = vmatpush1.msra.mxu0 %v106
    %108 = vmatprep.subr.mxu0 0.0
    %v109 = vand.u32 %v54, 4294901760
    %110 = vmatpush1.msra.mxu0 %v109
    %111 = vmatprep.subr.mxu0 0.0
    %v112 = vand.u32 %v55, 4294901760
    %113 = vmatpush1.msra.mxu0 %v112
    %114 = vmatprep.subr.mxu0 0.0
    %v115 = vand.u32 %v56, 4294901760
    %116 = vmatpush1.msra.mxu0 %v115
    %117 = vmatprep.subr.mxu0 0.0
    %v118 = vand.u32 %v57, 4294901760
    %119 = vmatpush1.msra.mxu0 %v118
    %120 = vmatprep.subr.mxu0 0.0
    %v121 = vand.u32 %v58, 4294901760
    %122 = vmatpush1.msra.mxu0 %v121
    %123 = vmatprep.subr.mxu0 0.0
    %v124 = vand.u32 %v59, 4294901760
    %125 = vmatpush1.msra.mxu0 %v124
    %126 = vmatprep.subr.mxu0 0.0
    %v127 = vand.u32 %v60, 4294901760
    %128 = vmatpush1.msra.mxu0 %v127
    %129 = vmatprep.subr.mxu0 0.0
    %v130 = vand.u32 %v61, 4294901760
    %131 = vmatpush1.msra.mxu0 %v130
    %132 = vmatprep.subr.mxu0 0.0
    %v133 = vand.u32 %v62, 4294901760
    %134 = vmatpush1.msra.mxu0 %v133
    %135 = vmatprep.subr.mxu0 0.0
    %v136 = vand.u32 %v63, 4294901760
    %137 = vmatpush1.msra.mxu0 %v136
    %138 = vmatprep.subr.mxu0 0.0
    %v139 = vand.u32 %v64, 4294901760
    %140 = vmatpush1.msra.mxu0 %v139
    %141 = vmatprep.subr.mxu0 0.0
    %v142 = vand.u32 %v65, 4294901760
    %143 = vmatpush1.msra.mxu0 %v142
    %144 = vmatprep.subr.mxu0 0.0
    %v145 = vand.u32 %v66, 4294901760
    %146 = vmatpush1.msra.mxu0 %v145
    %147 = vmatprep.subr.mxu0 0.0
    %v148 = vand.u32 %v67, 4294901760
    %149 = vmatpush1.msra.mxu0 %v148
    %150 = vmatprep.subr.mxu0 0.0
    %v151 = vand.u32 %v68, 4294901760
    %152 = vmatpush1.msra.mxu0 %v151
    %153 = vmatprep.subr.mxu0 0.0
    %v154 = vand.u32 %v69, 4294901760
    %155 = vmatpush1.msra.mxu0 %v154
    %156 = vmatprep.subr.mxu0 0.0
    %v157 = vand.u32 %v70, 4294901760
    %158 = vmatpush1.msra.mxu0 %v157
    %159 = vmatprep.subr.mxu0 0.0
    %v160 = vand.u32 %v71, 4294901760
    %161 = vmatpush1.msra.mxu0 %v160
    %162 = vmatprep.subr.mxu0 0.0
    %v163 = vand.u32 %v72, 4294901760
    %164 = vmatpush1.msra.mxu0 %v163
    %165 = vmatprep.subr.mxu0 0.0
    %v166 = vand.u32 %v73, 4294901760
    %167 = vmatpush1.msra.mxu0 %v166
    %168 = vmatprep.subr.mxu0 0.0
    %v169 = vand.u32 %v74, 4294901760
    %170 = vmatpush1.msra.mxu0 %v169
    %v171 = vand.u32 %v42, 4294901760
    %v172 = vsub.f32 %v42, %v171
    %v173 = vand.u32 %v172, 4294901760
    %v174 = vsub.f32 %v172, %v173
    %v175 = vand.u32 %v174, 4294901760
    %176 = vmatprep.mubr.f32.mxu0 %v175
    %v177 = vand.u32 %v41, 4294901760
    %v178 = vsub.f32 %v41, %v177
    %v179 = vand.u32 %v178, 4294901760
    %v180 = vsub.f32 %v178, %v179
    %v181 = vand.u32 %v180, 4294901760
    %182 = vmatmul.mubr.f32.gmra.mrb[0].mxu0 %v181
    %v183 = vpop.f32.mrb[0].mxu0
    %v184 = vadd.f32 0.0, %v183
    %v185 = vpop.f32.mrb[0].mxu0
    %186 = vdwg.mxu0
    %187 = vmatprep.subr.mxu0 0.0
    %v188 = vand.u32 %v43, 4294901760
    %v189 = vsub.f32 %v43, %v188
    %v190 = vand.u32 %v189, 4294901760
    %v191 = vsub.f32 %v189, %v190
    %v192 = vand.u32 %v191, 4294901760
    %193 = vmatpush1.msra.mxu0 %v192
    %194 = vmatprep.subr.mxu0 0.0
    %v195 = vand.u32 %v44, 4294901760
    %v196 = vsub.f32 %v44, %v195
    %v197 = vand.u32 %v196, 4294901760
    %v198 = vsub.f32 %v196, %v197
    %v199 = vand.u32 %v198, 4294901760
    %200 = vmatpush1.msra.mxu0 %v199
    %201 = vmatprep.subr.mxu0 0.0
    %v202 = vand.u32 %v45, 4294901760
    %v203 = vsub.f32 %v45, %v202
    %v204 = vand.u32 %v203, 4294901760
    %v205 = vsub.f32 %v203, %v204
    %v206 = vand.u32 %v205, 4294901760
    %207 = vmatpush1.msra.mxu0 %v206
    %208 = vmatprep.subr.mxu0 0.0
    %v209 = vand.u32 %v46, 4294901760
    %v210 = vsub.f32 %v46, %v209
    %v211 = vand.u32 %v210, 4294901760
    %v212 = vsub.f32 %v210, %v211
    %v213 = vand.u32 %v212, 4294901760
    %214 = vmatpush1.msra.mxu0 %v213
    %215 = vmatprep.subr.mxu0 0.0
    %v216 = vand.u32 %v47, 4294901760
    %v217 = vsub.f32 %v47, %v216
    %v218 = vand.u32 %v217, 4294901760
    %v219 = vsub.f32 %v217, %v218
    %v220 = vand.u32 %v219, 4294901760
    %221 = vmatpush1.msra.mxu0 %v220
    %222 = vmatprep.subr.mxu0 0.0
    %v223 = vand.u32 %v48, 4294901760
    %v224 = vsub.f32 %v48, %v223
    %v225 = vand.u32 %v224, 4294901760
    %v226 = vsub.f32 %v224, %v225
    %v227 = vand.u32 %v226, 4294901760
    %228 = vmatpush1.msra.mxu0 %v227
    %229 = vmatprep.subr.mxu0 0.0
    %v230 = vand.u32 %v49, 4294901760
    %v231 = vsub.f32 %v49, %v230
    %v232 = vand.u32 %v231, 4294901760
    %v233 = vsub.f32 %v231, %v232
    %v234 = vand.u32 %v233, 4294901760
    %235 = vmatpush1.msra.mxu0 %v234
    %236 = vmatprep.subr.mxu0 0.0
    %v237 = vand.u32 %v50, 4294901760
    %v238 = vsub.f32 %v50, %v237
    %v239 = vand.u32 %v238, 4294901760
    %v240 = vsub.f32 %v238, %v239
    %v241 = vand.u32 %v240, 4294901760
    %242 = vmatpush1.msra.mxu0 %v241
    %243 = vmatprep.subr.mxu0 0.0
    %v244 = vand.u32 %v51, 4294901760
    %v245 = vsub.f32 %v51, %v244
    %v246 = vand.u32 %v245, 4294901760
    %v247 = vsub.f32 %v245, %v246
    %v248 = vand.u32 %v247, 4294901760
    %249 = vmatpush1.msra.mxu0 %v248
    %250 = vmatprep.subr.mxu0 0.0
    %v251 = vand.u32 %v52, 4294901760
    %v252 = vsub.f32 %v52, %v251
    %v253 = vand.u32 %v252, 4294901760
    %v254 = vsub.f32 %v252, %v253
    %v255 = vand.u32 %v254, 4294901760
    %256 = vmatpush1.msra.mxu0 %v255
    %257 = vmatprep.subr.mxu0 0.0
    %v258 = vand.u32 %v53, 4294901760
    %v259 = vsub.f32 %v53, %v258
    %v260 = vand.u32 %v259, 4294901760
    %v261 = vsub.f32 %v259, %v260
    %v262 = vand.u32 %v261, 4294901760
    %263 = vmatpush1.msra.mxu0 %v262
    %264 = vmatprep.subr.mxu0 0.0
    %v265 = vand.u32 %v54, 4294901760
    %v266 = vsub.f32 %v54, %v265
    %v267 = vand.u32 %v266, 4294901760
    %v268 = vsub.f32 %v266, %v267
    %v269 = vand.u32 %v268, 4294901760
    %270 = vmatpush1.msra.mxu0 %v269
    %271 = vmatprep.subr.mxu0 0.0
    %v272 = vand.u32 %v55, 4294901760
    %v273 = vsub.f32 %v55, %v272
    %v274 = vand.u32 %v273, 4294901760
    %v275 = vsub.f32 %v273, %v274
    %v276 = vand.u32 %v275, 4294901760
    %277 = vmatpush1.msra.mxu0 %v276
    %278 = vmatprep.subr.mxu0 0.0
    %v279 = vand.u32 %v56, 4294901760
    %v280 = vsub.f32 %v56, %v279
    %v281 = vand.u32 %v280, 4294901760
    %v282 = vsub.f32 %v280, %v281
    %v283 = vand.u32 %v282, 4294901760
    %284 = vmatpush1.msra.mxu0 %v283
    %285 = vmatprep.subr.mxu0 0.0
    %v286 = vand.u32 %v57, 4294901760
    %v287 = vsub.f32 %v57, %v286
    %v288 = vand.u32 %v287, 4294901760
    %v289 = vsub.f32 %v287, %v288
    %v290 = vand.u32 %v289, 4294901760
    %291 = vmatpush1.msra.mxu0 %v290
    %292 = vmatprep.subr.mxu0 0.0
    %v293 = vand.u32 %v58, 4294901760
    %v294 = vsub.f32 %v58, %v293
    %v295 = vand.u32 %v294, 4294901760
    %v296 = vsub.f32 %v294, %v295
    %v297 = vand.u32 %v296, 4294901760
    %298 = vmatpush1.msra.mxu0 %v297
    %299 = vmatprep.subr.mxu0 0.0
    %v300 = vand.u32 %v59, 4294901760
    %v301 = vsub.f32 %v59, %v300
    %v302 = vand.u32 %v301, 4294901760
    %v303 = vsub.f32 %v301, %v302
    %v304 = vand.u32 %v303, 4294901760
    %305 = vmatpush1.msra.mxu0 %v304
    %306 = vmatprep.subr.mxu0 0.0
    %v307 = vand.u32 %v60, 4294901760
    %v308 = vsub.f32 %v60, %v307
    %v309 = vand.u32 %v308, 4294901760
    %v310 = vsub.f32 %v308, %v309
    %v311 = vand.u32 %v310, 4294901760
    %312 = vmatpush1.msra.mxu0 %v311
    %313 = vmatprep.subr.mxu0 0.0
    %v314 = vand.u32 %v61, 4294901760
    %v315 = vsub.f32 %v61, %v314
    %v316 = vand.u32 %v315, 4294901760
    %v317 = vsub.f32 %v315, %v316
    %v318 = vand.u32 %v317, 4294901760
    %319 = vmatpush1.msra.mxu0 %v318
    %320 = vmatprep.subr.mxu0 0.0
    %v321 = vand.u32 %v62, 4294901760
    %v322 = vsub.f32 %v62, %v321
    %v323 = vand.u32 %v322, 4294901760
    %v324 = vsub.f32 %v322, %v323
    %v325 = vand.u32 %v324, 4294901760
    %326 = vmatpush1.msra.mxu0 %v325
    %327 = vmatprep.subr.mxu0 0.0
    %v328 = vand.u32 %v63, 4294901760
    %v329 = vsub.f32 %v63, %v328
    %v330 = vand.u32 %v329, 4294901760
    %v331 = vsub.f32 %v329, %v330
    %v332 = vand.u32 %v331, 4294901760
    %333 = vmatpush1.msra.mxu0 %v332
    %334 = vmatprep.subr.mxu0 0.0
    %v335 = vand.u32 %v64, 4294901760
    %v336 = vsub.f32 %v64, %v335
    %v337 = vand.u32 %v336, 4294901760
    %v338 = vsub.f32 %v336, %v337
    %v339 = vand.u32 %v338, 4294901760
    %340 = vmatpush1.msra.mxu0 %v339
    %341 = vmatprep.subr.mxu0 0.0
    %v342 = vand.u32 %v65, 4294901760
    %v343 = vsub.f32 %v65, %v342
    %v344 = vand.u32 %v343, 4294901760
    %v345 = vsub.f32 %v343, %v344
    %v346 = vand.u32 %v345, 4294901760
    %347 = vmatpush1.msra.mxu0 %v346
    %348 = vmatprep.subr.mxu0 0.0
    %v349 = vand.u32 %v66, 4294901760
    %v350 = vsub.f32 %v66, %v349
    %v351 = vand.u32 %v350, 4294901760
    %v352 = vsub.f32 %v350, %v351
    %v353 = vand.u32 %v352, 4294901760
    %354 = vmatpush1.msra.mxu0 %v353
    %355 = vmatprep.subr.mxu0 0.0
    %v356 = vand.u32 %v67, 4294901760
    %v357 = vsub.f32 %v67, %v356
    %v358 = vand.u32 %v357, 4294901760
    %v359 = vsub.f32 %v357, %v358
    %v360 = vand.u32 %v359, 4294901760
    %361 = vmatpush1.msra.mxu0 %v360
    %362 = vmatprep.subr.mxu0 0.0
    %v363 = vand.u32 %v68, 4294901760
    %v364 = vsub.f32 %v68, %v363
    %v365 = vand.u32 %v364, 4294901760
    %v366 = vsub.f32 %v364, %v365
    %v367 = vand.u32 %v366, 4294901760
    %368 = vmatpush1.msra.mxu0 %v367
    %369 = vmatprep.subr.mxu0 0.0
    %v370 = vand.u32 %v69, 4294901760
    %v371 = vsub.f32 %v69, %v370
    %v372 = vand.u32 %v371, 4294901760
    %v373 = vsub.f32 %v371, %v372
    %v374 = vand.u32 %v373, 4294901760
    %375 = vmatpush1.msra.mxu0 %v374
    %376 = vmatprep.subr.mxu0 0.0
    %v377 = vand.u32 %v70, 4294901760
    %v378 = vsub.f32 %v70, %v377
    %v379 = vand.u32 %v378, 4294901760
    %v380 = vsub.f32 %v378, %v379
    %v381 = vand.u32 %v380, 4294901760
    %382 = vmatpush1.msra.mxu0 %v381
    %383 = vmatprep.subr.mxu0 0.0
    %v384 = vand.u32 %v71, 4294901760
    %v385 = vsub.f32 %v71, %v384
    %v386 = vand.u32 %v385, 4294901760
    %v387 = vsub.f32 %v385, %v386
    %v388 = vand.u32 %v387, 4294901760
    %389 = vmatpush1.msra.mxu0 %v388
    %390 = vmatprep.subr.mxu0 0.0
    %v391 = vand.u32 %v72, 4294901760
    %v392 = vsub.f32 %v72, %v391
    %v393 = vand.u32 %v392, 4294901760
    %v394 = vsub.f32 %v392, %v393
    %v395 = vand.u32 %v394, 4294901760
    %396 = vmatpush1.msra.mxu0 %v395
    %397 = vmatprep.subr.mxu0 0.0
    %v398 = vand.u32 %v73, 4294901760
    %v399 = vsub.f32 %v73, %v398
    %v400 = vand.u32 %v399, 4294901760
    %v401 = vsub.f32 %v399, %v400
    %v402 = vand.u32 %v401, 4294901760
    %403 = vmatpush1.msra.mxu0 %v402
    %404 = vmatprep.subr.mxu0 0.0
    %v405 = vand.u32 %v74, 4294901760
    %v406 = vsub.f32 %v74, %v405
    %v407 = vand.u32 %v406, 4294901760
    %v408 = vsub.f32 %v406, %v407
    %v409 = vand.u32 %v408, 4294901760
    %410 = vmatpush1.msra.mxu0 %v409
    %v411 = vand.u32 %v42, 4294901760
    %412 = vmatprep.mubr.f32.mxu0 %v411
    %v413 = vand.u32 %v41, 4294901760
    %414 = vmatmul.mubr.f32.gmra.mrb[0].mxu0 %v413
    %v415 = vpop.f32.mrb[0].mxu0
    %v416 = vadd.f32 %v184, %v415
    %v417 = vpop.f32.mrb[0].mxu0
    %418 = vdwg.mxu0
    %419 = vmatprep.subr.mxu0 0.0
    %v420 = vand.u32 %v43, 4294901760
    %v421 = vsub.f32 %v43, %v420
    %422 = vmatpush1.msra.mxu0 %v421
    %423 = vmatprep.subr.mxu0 0.0
    %v424 = vand.u32 %v44, 4294901760
    %v425 = vsub.f32 %v44, %v424
    %426 = vmatpush1.msra.mxu0 %v425
    %427 = vmatprep.subr.mxu0 0.0
    %v428 = vand.u32 %v45, 4294901760
    %v429 = vsub.f32 %v45, %v428
    %430 = vmatpush1.msra.mxu0 %v429
    %431 = vmatprep.subr.mxu0 0.0
    %v432 = vand.u32 %v46, 4294901760
    %v433 = vsub.f32 %v46, %v432
    %434 = vmatpush1.msra.mxu0 %v433
    %435 = vmatprep.subr.mxu0 0.0
    %v436 = vand.u32 %v47, 4294901760
    %v437 = vsub.f32 %v47, %v436
    %438 = vmatpush1.msra.mxu0 %v437
    %439 = vmatprep.subr.mxu0 0.0
    %v440 = vand.u32 %v48, 4294901760
    %v441 = vsub.f32 %v48, %v440
    %442 = vmatpush1.msra.mxu0 %v441
    %443 = vmatprep.subr.mxu0 0.0
    %v444 = vand.u32 %v49, 4294901760
    %v445 = vsub.f32 %v49, %v444
    %446 = vmatpush1.msra.mxu0 %v445
    %447 = vmatprep.subr.mxu0 0.0
    %v448 = vand.u32 %v50, 4294901760
    %v449 = vsub.f32 %v50, %v448
    %450 = vmatpush1.msra.mxu0 %v449
    %451 = vmatprep.subr.mxu0 0.0
    %v452 = vand.u32 %v51, 4294901760
    %v453 = vsub.f32 %v51, %v452
    %454 = vmatpush1.msra.mxu0 %v453
    %455 = vmatprep.subr.mxu0 0.0
    %v456 = vand.u32 %v52, 4294901760
    %v457 = vsub.f32 %v52, %v456
    %458 = vmatpush1.msra.mxu0 %v457
    %459 = vmatprep.subr.mxu0 0.0
    %v460 = vand.u32 %v53, 4294901760
    %v461 = vsub.f32 %v53, %v460
    %462 = vmatpush1.msra.mxu0 %v461
    %463 = vmatprep.subr.mxu0 0.0
    %v464 = vand.u32 %v54, 4294901760
    %v465 = vsub.f32 %v54, %v464
    %466 = vmatpush1.msra.mxu0 %v465
    %467 = vmatprep.subr.mxu0 0.0
    %v468 = vand.u32 %v55, 4294901760
    %v469 = vsub.f32 %v55, %v468
    %470 = vmatpush1.msra.mxu0 %v469
    %471 = vmatprep.subr.mxu0 0.0
    %v472 = vand.u32 %v56, 4294901760
    %v473 = vsub.f32 %v56, %v472
    %474 = vmatpush1.msra.mxu0 %v473
    %475 = vmatprep.subr.mxu0 0.0
    %v476 = vand.u32 %v57, 4294901760
    %v477 = vsub.f32 %v57, %v476
    %478 = vmatpush1.msra.mxu0 %v477
    %479 = vmatprep.subr.mxu0 0.0
    %v480 = vand.u32 %v58, 4294901760
    %v481 = vsub.f32 %v58, %v480
    %482 = vmatpush1.msra.mxu0 %v481
    %483 = vmatprep.subr.mxu0 0.0
    %v484 = vand.u32 %v59, 4294901760
    %v485 = vsub.f32 %v59, %v484
    %486 = vmatpush1.msra.mxu0 %v485
    %487 = vmatprep.subr.mxu0 0.0
    %v488 = vand.u32 %v60, 4294901760
    %v489 = vsub.f32 %v60, %v488
    %490 = vmatpush1.msra.mxu0 %v489
    %491 = vmatprep.subr.mxu0 0.0
    %v492 = vand.u32 %v61, 4294901760
    %v493 = vsub.f32 %v61, %v492
    %494 = vmatpush1.msra.mxu0 %v493
    %495 = vmatprep.subr.mxu0 0.0
    %v496 = vand.u32 %v62, 4294901760
    %v497 = vsub.f32 %v62, %v496
    %498 = vmatpush1.msra.mxu0 %v497
    %499 = vmatprep.subr.mxu0 0.0
    %v500 = vand.u32 %v63, 4294901760
    %v501 = vsub.f32 %v63, %v500
    %502 = vmatpush1.msra.mxu0 %v501
    %503 = vmatprep.subr.mxu0 0.0
    %v504 = vand.u32 %v64, 4294901760
    %v505 = vsub.f32 %v64, %v504
    %506 = vmatpush1.msra.mxu0 %v505
    %507 = vmatprep.subr.mxu0 0.0
    %v508 = vand.u32 %v65, 4294901760
    %v509 = vsub.f32 %v65, %v508
    %510 = vmatpush1.msra.mxu0 %v509
    %511 = vmatprep.subr.mxu0 0.0
    %v512 = vand.u32 %v66, 4294901760
    %v513 = vsub.f32 %v66, %v512
    %514 = vmatpush1.msra.mxu0 %v513
    %515 = vmatprep.subr.mxu0 0.0
    %v516 = vand.u32 %v67, 4294901760
    %v517 = vsub.f32 %v67, %v516
    %518 = vmatpush1.msra.mxu0 %v517
    %519 = vmatprep.subr.mxu0 0.0
    %v520 = vand.u32 %v68, 4294901760
    %v521 = vsub.f32 %v68, %v520
    %522 = vmatpush1.msra.mxu0 %v521
    %523 = vmatprep.subr.mxu0 0.0
    %v524 = vand.u32 %v69, 4294901760
    %v525 = vsub.f32 %v69, %v524
    %526 = vmatpush1.msra.mxu0 %v525
    %527 = vmatprep.subr.mxu0 0.0
    %v528 = vand.u32 %v70, 4294901760
    %v529 = vsub.f32 %v70, %v528
    %530 = vmatpush1.msra.mxu0 %v529
    %531 = vmatprep.subr.mxu0 0.0
    %v532 = vand.u32 %v71, 4294901760
    %v533 = vsub.f32 %v71, %v532
    %534 = vmatpush1.msra.mxu0 %v533
    %535 = vmatprep.subr.mxu0 0.0
    %v536 = vand.u32 %v72, 4294901760
    %v537 = vsub.f32 %v72, %v536
    %538 = vmatpush1.msra.mxu0 %v537
    %539 = vmatprep.subr.mxu0 0.0
    %v540 = vand.u32 %v73, 4294901760
    %v541 = vsub.f32 %v73, %v540
    %542 = vmatpush1.msra.mxu0 %v541
    %543 = vmatprep.subr.mxu0 0.0
    %v544 = vand.u32 %v74, 4294901760
    %v545 = vsub.f32 %v74, %v544
    %546 = vmatpush1.msra.mxu0 %v545
    %v547 = vand.u32 %v42, 4294901760
    %v548 = vsub.f32 %v42, %v547
    %549 = vmatprep.mubr.f32.mxu0 %v548
    %v550 = vand.u32 %v41, 4294901760
    %v551 = vsub.f32 %v41, %v550
    %552 = vmatmul.mubr.f32.gmra.mrb[0].mxu0 %v551
    %v553 = vpop.f32.mrb[0].mxu0
    %v554 = vadd.f32 %v416, %v553
    %v555 = vpop.f32.mrb[0].mxu0
    %556 = vdwg.mxu0
    %557 = vmatprep.subr.mxu0 0.0
    %v558 = vand.u32 %v43, 4294901760
    %559 = vmatpush1.msra.mxu0 %v558
    %560 = vmatprep.subr.mxu0 0.0
    %v561 = vand.u32 %v44, 4294901760
    %562 = vmatpush1.msra.mxu0 %v561
    %563 = vmatprep.subr.mxu0 0.0
    %v564 = vand.u32 %v45, 4294901760
    %565 = vmatpush1.msra.mxu0 %v564
    %566 = vmatprep.subr.mxu0 0.0
    %v567 = vand.u32 %v46, 4294901760
    %568 = vmatpush1.msra.mxu0 %v567
    %569 = vmatprep.subr.mxu0 0.0
    %v570 = vand.u32 %v47, 4294901760
    %571 = vmatpush1.msra.mxu0 %v570
    %572 = vmatprep.subr.mxu0 0.0
    %v573 = vand.u32 %v48, 4294901760
    %574 = vmatpush1.msra.mxu0 %v573
    %575 = vmatprep.subr.mxu0 0.0
    %v576 = vand.u32 %v49, 4294901760
    %577 = vmatpush1.msra.mxu0 %v576
    %578 = vmatprep.subr.mxu0 0.0
    %v579 = vand.u32 %v50, 4294901760
    %580 = vmatpush1.msra.mxu0 %v579
    %581 = vmatprep.subr.mxu0 0.0
    %v582 = vand.u32 %v51, 4294901760
    %583 = vmatpush1.msra.mxu0 %v582
    %584 = vmatprep.subr.mxu0 0.0
    %v585 = vand.u32 %v52, 4294901760
    %586 = vmatpush1.msra.mxu0 %v585
    %587 = vmatprep.subr.mxu0 0.0
    %v588 = vand.u32 %v53, 4294901760
    %589 = vmatpush1.msra.mxu0 %v588
    %590 = vmatprep.subr.mxu0 0.0
    %v591 = vand.u32 %v54, 4294901760
    %592 = vmatpush1.msra.mxu0 %v591
    %593 = vmatprep.subr.mxu0 0.0
    %v594 = vand.u32 %v55, 4294901760
    %595 = vmatpush1.msra.mxu0 %v594
    %596 = vmatprep.subr.mxu0 0.0
    %v597 = vand.u32 %v56, 4294901760
    %598 = vmatpush1.msra.mxu0 %v597
    %599 = vmatprep.subr.mxu0 0.0
    %v600 = vand.u32 %v57, 4294901760
    %601 = vmatpush1.msra.mxu0 %v600
    %602 = vmatprep.subr.mxu0 0.0
    %v603 = vand.u32 %v58, 4294901760
    %604 = vmatpush1.msra.mxu0 %v603
    %605 = vmatprep.subr.mxu0 0.0
    %v606 = vand.u32 %v59, 4294901760
    %607 = vmatpush1.msra.mxu0 %v606
    %608 = vmatprep.subr.mxu0 0.0
    %v609 = vand.u32 %v60, 4294901760
    %610 = vmatpush1.msra.mxu0 %v609
    %611 = vmatprep.subr.mxu0 0.0
    %v612 = vand.u32 %v61, 4294901760
    %613 = vmatpush1.msra.mxu0 %v612
    %614 = vmatprep.subr.mxu0 0.0
    %v615 = vand.u32 %v62, 4294901760
    %616 = vmatpush1.msra.mxu0 %v615
    %617 = vmatprep.subr.mxu0 0.0
    %v618 = vand.u32 %v63, 4294901760
    %619 = vmatpush1.msra.mxu0 %v618
    %620 = vmatprep.subr.mxu0 0.0
    %v621 = vand.u32 %v64, 4294901760
    %622 = vmatpush1.msra.mxu0 %v621
    %623 = vmatprep.subr.mxu0 0.0
    %v624 = vand.u32 %v65, 4294901760
    %625 = vmatpush1.msra.mxu0 %v624
    %626 = vmatprep.subr.mxu0 0.0
    %v627 = vand.u32 %v66, 4294901760
    %628 = vmatpush1.msra.mxu0 %v627
    %629 = vmatprep.subr.mxu0 0.0
    %v630 = vand.u32 %v67, 4294901760
    %631 = vmatpush1.msra.mxu0 %v630
    %632 = vmatprep.subr.mxu0 0.0
    %v633 = vand.u32 %v68, 4294901760
    %634 = vmatpush1.msra.mxu0 %v633
    %635 = vmatprep.subr.mxu0 0.0
    %v636 = vand.u32 %v69, 4294901760
    %637 = vmatpush1.msra.mxu0 %v636
    %638 = vmatprep.subr.mxu0 0.0
    %v639 = vand.u32 %v70, 4294901760
    %640 = vmatpush1.msra.mxu0 %v639
    %641 = vmatprep.subr.mxu0 0.0
    %v642 = vand.u32 %v71, 4294901760
    %643 = vmatpush1.msra.mxu0 %v642
    %644 = vmatprep.subr.mxu0 0.0
    %v645 = vand.u32 %v72, 4294901760
    %646 = vmatpush1.msra.mxu0 %v645
    %647 = vmatprep.subr.mxu0 0.0
    %v648 = vand.u32 %v73, 4294901760
    %649 = vmatpush1.msra.mxu0 %v648
    %650 = vmatprep.subr.mxu0 0.0
    %v651 = vand.u32 %v74, 4294901760
    %652 = vmatpush1.msra.mxu0 %v651
    %v653 = vand.u32 %v42, 4294901760
    %v654 = vsub.f32 %v42, %v653
    %v655 = vand.u32 %v654, 4294901760
    %656 = vmatprep.mubr.f32.mxu0 %v655
    %v657 = vand.u32 %v41, 4294901760
    %v658 = vsub.f32 %v41, %v657
    %v659 = vand.u32 %v658, 4294901760
    %660 = vmatmul.mubr.f32.gmra.mrb[0].mxu0 %v659
    %v661 = vpop.f32.mrb[0].mxu0
    %v662 = vadd.f32 %v554, %v661
    %v663 = vpop.f32.mrb[0].mxu0
    %664 = vdwg.mxu0
    %665 = vmatprep.subr.mxu0 0.0
    %v666 = vand.u32 %v43, 4294901760
    %v667 = vsub.f32 %v43, %v666
    %v668 = vand.u32 %v667, 4294901760
    %669 = vmatpush1.msra.mxu0 %v668
    %670 = vmatprep.subr.mxu0 0.0
    %v671 = vand.u32 %v44, 4294901760
    %v672 = vsub.f32 %v44, %v671
    %v673 = vand.u32 %v672, 4294901760
    %674 = vmatpush1.msra.mxu0 %v673
    %675 = vmatprep.subr.mxu0 0.0
    %v676 = vand.u32 %v45, 4294901760
    %v677 = vsub.f32 %v45, %v676
    %v678 = vand.u32 %v677, 4294901760
    %679 = vmatpush1.msra.mxu0 %v678
    %680 = vmatprep.subr.mxu0 0.0
    %v681 = vand.u32 %v46, 4294901760
    %v682 = vsub.f32 %v46, %v681
    %v683 = vand.u32 %v682, 4294901760
    %684 = vmatpush1.msra.mxu0 %v683
    %685 = vmatprep.subr.mxu0 0.0
    %v686 = vand.u32 %v47, 4294901760
    %v687 = vsub.f32 %v47, %v686
    %v688 = vand.u32 %v687, 4294901760
    %689 = vmatpush1.msra.mxu0 %v688
    %690 = vmatprep.subr.mxu0 0.0
    %v691 = vand.u32 %v48, 4294901760
    %v692 = vsub.f32 %v48, %v691
    %v693 = vand.u32 %v692, 4294901760
    %694 = vmatpush1.msra.mxu0 %v693
    %695 = vmatprep.subr.mxu0 0.0
    %v696 = vand.u32 %v49, 4294901760
    %v697 = vsub.f32 %v49, %v696
    %v698 = vand.u32 %v697, 4294901760
    %699 = vmatpush1.msra.mxu0 %v698
    %700 = vmatprep.subr.mxu0 0.0
    %v701 = vand.u32 %v50, 4294901760
    %v702 = vsub.f32 %v50, %v701
    %v703 = vand.u32 %v702, 4294901760
    %704 = vmatpush1.msra.mxu0 %v703
    %705 = vmatprep.subr.mxu0 0.0
    %v706 = vand.u32 %v51, 4294901760
    %v707 = vsub.f32 %v51, %v706
    %v708 = vand.u32 %v707, 4294901760
    %709 = vmatpush1.msra.mxu0 %v708
    %710 = vmatprep.subr.mxu0 0.0
    %v711 = vand.u32 %v52, 4294901760
    %v712 = vsub.f32 %v52, %v711
    %v713 = vand.u32 %v712, 4294901760
    %714 = vmatpush1.msra.mxu0 %v713
    %715 = vmatprep.subr.mxu0 0.0
    %v716 = vand.u32 %v53, 4294901760
    %v717 = vsub.f32 %v53, %v716
    %v718 = vand.u32 %v717, 4294901760
    %719 = vmatpush1.msra.mxu0 %v718
    %720 = vmatprep.subr.mxu0 0.0
    %v721 = vand.u32 %v54, 4294901760
    %v722 = vsub.f32 %v54, %v721
    %v723 = vand.u32 %v722, 4294901760
    %724 = vmatpush1.msra.mxu0 %v723
    %725 = vmatprep.subr.mxu0 0.0
    %v726 = vand.u32 %v55, 4294901760
    %v727 = vsub.f32 %v55, %v726
    %v728 = vand.u32 %v727, 4294901760
    %729 = vmatpush1.msra.mxu0 %v728
    %730 = vmatprep.subr.mxu0 0.0
    %v731 = vand.u32 %v56, 4294901760
    %v732 = vsub.f32 %v56, %v731
    %v733 = vand.u32 %v732, 4294901760
    %734 = vmatpush1.msra.mxu0 %v733
    %735 = vmatprep.subr.mxu0 0.0
    %v736 = vand.u32 %v57, 4294901760
    %v737 = vsub.f32 %v57, %v736
    %v738 = vand.u32 %v737, 4294901760
    %739 = vmatpush1.msra.mxu0 %v738
    %740 = vmatprep.subr.mxu0 0.0
    %v741 = vand.u32 %v58, 4294901760
    %v742 = vsub.f32 %v58, %v741
    %v743 = vand.u32 %v742, 4294901760
    %744 = vmatpush1.msra.mxu0 %v743
    %745 = vmatprep.subr.mxu0 0.0
    %v746 = vand.u32 %v59, 4294901760
    %v747 = vsub.f32 %v59, %v746
    %v748 = vand.u32 %v747, 4294901760
    %749 = vmatpush1.msra.mxu0 %v748
    %750 = vmatprep.subr.mxu0 0.0
    %v751 = vand.u32 %v60, 4294901760
    %v752 = vsub.f32 %v60, %v751
    %v753 = vand.u32 %v752, 4294901760
    %754 = vmatpush1.msra.mxu0 %v753
    %755 = vmatprep.subr.mxu0 0.0
    %v756 = vand.u32 %v61, 4294901760
    %v757 = vsub.f32 %v61, %v756
    %v758 = vand.u32 %v757, 4294901760
    %759 = vmatpush1.msra.mxu0 %v758
    %760 = vmatprep.subr.mxu0 0.0
    %v761 = vand.u32 %v62, 4294901760
    %v762 = vsub.f32 %v62, %v761
    %v763 = vand.u32 %v762, 4294901760
    %764 = vmatpush1.msra.mxu0 %v763
    %765 = vmatprep.subr.mxu0 0.0
    %v766 = vand.u32 %v63, 4294901760
    %v767 = vsub.f32 %v63, %v766
    %v768 = vand.u32 %v767, 4294901760
    %769 = vmatpush1.msra.mxu0 %v768
    %770 = vmatprep.subr.mxu0 0.0
    %v771 = vand.u32 %v64, 4294901760
    %v772 = vsub.f32 %v64, %v771
    %v773 = vand.u32 %v772, 4294901760
    %774 = vmatpush1.msra.mxu0 %v773
    %775 = vmatprep.subr.mxu0 0.0
    %v776 = vand.u32 %v65, 4294901760
    %v777 = vsub.f32 %v65, %v776
    %v778 = vand.u32 %v777, 4294901760
    %779 = vmatpush1.msra.mxu0 %v778
    %780 = vmatprep.subr.mxu0 0.0
    %v781 = vand.u32 %v66, 4294901760
    %v782 = vsub.f32 %v66, %v781
    %v783 = vand.u32 %v782, 4294901760
    %784 = vmatpush1.msra.mxu0 %v783
    %785 = vmatprep.subr.mxu0 0.0
    %v786 = vand.u32 %v67, 4294901760
    %v787 = vsub.f32 %v67, %v786
    %v788 = vand.u32 %v787, 4294901760
    %789 = vmatpush1.msra.mxu0 %v788
    %790 = vmatprep.subr.mxu0 0.0
    %v791 = vand.u32 %v68, 4294901760
    %v792 = vsub.f32 %v68, %v791
    %v793 = vand.u32 %v792, 4294901760
    %794 = vmatpush1.msra.mxu0 %v793
    %795 = vmatprep.subr.mxu0 0.0
    %v796 = vand.u32 %v69, 4294901760
    %v797 = vsub.f32 %v69, %v796
    %v798 = vand.u32 %v797, 4294901760
    %799 = vmatpush1.msra.mxu0 %v798
    %800 = vmatprep.subr.mxu0 0.0
    %v801 = vand.u32 %v70, 4294901760
    %v802 = vsub.f32 %v70, %v801
    %v803 = vand.u32 %v802, 4294901760
    %804 = vmatpush1.msra.mxu0 %v803
    %805 = vmatprep.subr.mxu0 0.0
    %v806 = vand.u32 %v71, 4294901760
    %v807 = vsub.f32 %v71, %v806
    %v808 = vand.u32 %v807, 4294901760
    %809 = vmatpush1.msra.mxu0 %v808
    %810 = vmatprep.subr.mxu0 0.0
    %v811 = vand.u32 %v72, 4294901760
    %v812 = vsub.f32 %v72, %v811
    %v813 = vand.u32 %v812, 4294901760
    %814 = vmatpush1.msra.mxu0 %v813
    %815 = vmatprep.subr.mxu0 0.0
    %v816 = vand.u32 %v73, 4294901760
    %v817 = vsub.f32 %v73, %v816
    %v818 = vand.u32 %v817, 4294901760
    %819 = vmatpush1.msra.mxu0 %v818
    %820 = vmatprep.subr.mxu0 0.0
    %v821 = vand.u32 %v74, 4294901760
    %v822 = vsub.f32 %v74, %v821
    %v823 = vand.u32 %v822, 4294901760
    %824 = vmatpush1.msra.mxu0 %v823
    %v825 = vand.u32 %v42, 4294901760
    %826 = vmatprep.mubr.f32.mxu0 %v825
    %v827 = vand.u32 %v41, 4294901760
    %828 = vmatmul.mubr.f32.gmra.mrb[0].mxu0 %v827
    %v829 = vpop.f32.mrb[0].mxu0
    %v830 = vadd.f32 %v662, %v829
    %v831 = vpop.f32.mrb[0].mxu0
    %832 = vdwg.mxu0
    %833 = vmatprep.subr.mxu0 0.0
    %v834 = vand.u32 %v43, 4294901760
    %835 = vmatpush1.msra.mxu0 %v834
    %836 = vmatprep.subr.mxu0 0.0
    %v837 = vand.u32 %v44, 4294901760
    %838 = vmatpush1.msra.mxu0 %v837
    %839 = vmatprep.subr.mxu0 0.0
    %v840 = vand.u32 %v45, 4294901760
    %841 = vmatpush1.msra.mxu0 %v840
    %842 = vmatprep.subr.mxu0 0.0
    %v843 = vand.u32 %v46, 4294901760
    %844 = vmatpush1.msra.mxu0 %v843
    %845 = vmatprep.subr.mxu0 0.0
    %v846 = vand.u32 %v47, 4294901760
    %847 = vmatpush1.msra.mxu0 %v846
    %848 = vmatprep.subr.mxu0 0.0
    %v849 = vand.u32 %v48, 4294901760
    %850 = vmatpush1.msra.mxu0 %v849
    %851 = vmatprep.subr.mxu0 0.0
    %v852 = vand.u32 %v49, 4294901760
    %853 = vmatpush1.msra.mxu0 %v852
    %854 = vmatprep.subr.mxu0 0.0
    %v855 = vand.u32 %v50, 4294901760
    %856 = vmatpush1.msra.mxu0 %v855
    %857 = vmatprep.subr.mxu0 0.0
    %v858 = vand.u32 %v51, 4294901760
    %859 = vmatpush1.msra.mxu0 %v858
    %860 = vmatprep.subr.mxu0 0.0
    %v861 = vand.u32 %v52, 4294901760
    %862 = vmatpush1.msra.mxu0 %v861
    %863 = vmatprep.subr.mxu0 0.0
    %v864 = vand.u32 %v53, 4294901760
    %865 = vmatpush1.msra.mxu0 %v864
    %866 = vmatprep.subr.mxu0 0.0
    %v867 = vand.u32 %v54, 4294901760
    %868 = vmatpush1.msra.mxu0 %v867
    %869 = vmatprep.subr.mxu0 0.0
    %v870 = vand.u32 %v55, 4294901760
    %871 = vmatpush1.msra.mxu0 %v870
    %872 = vmatprep.subr.mxu0 0.0
    %v873 = vand.u32 %v56, 4294901760
    %874 = vmatpush1.msra.mxu0 %v873
    %875 = vmatprep.subr.mxu0 0.0
    %v876 = vand.u32 %v57, 4294901760
    %877 = vmatpush1.msra.mxu0 %v876
    %878 = vmatprep.subr.mxu0 0.0
    %v879 = vand.u32 %v58, 4294901760
    %880 = vmatpush1.msra.mxu0 %v879
    %881 = vmatprep.subr.mxu0 0.0
    %v882 = vand.u32 %v59, 4294901760
    %883 = vmatpush1.msra.mxu0 %v882
    %884 = vmatprep.subr.mxu0 0.0
    %v885 = vand.u32 %v60, 4294901760
    %886 = vmatpush1.msra.mxu0 %v885
    %887 = vmatprep.subr.mxu0 0.0
    %v888 = vand.u32 %v61, 4294901760
    %889 = vmatpush1.msra.mxu0 %v888
    %890 = vmatprep.subr.mxu0 0.0
    %v891 = vand.u32 %v62, 4294901760
    %892 = vmatpush1.msra.mxu0 %v891
    %893 = vmatprep.subr.mxu0 0.0
    %v894 = vand.u32 %v63, 4294901760
    %895 = vmatpush1.msra.mxu0 %v894
    %896 = vmatprep.subr.mxu0 0.0
    %v897 = vand.u32 %v64, 4294901760
    %898 = vmatpush1.msra.mxu0 %v897
    %899 = vmatprep.subr.mxu0 0.0
    %v900 = vand.u32 %v65, 4294901760
    %901 = vmatpush1.msra.mxu0 %v900
    %902 = vmatprep.subr.mxu0 0.0
    %v903 = vand.u32 %v66, 4294901760
    %904 = vmatpush1.msra.mxu0 %v903
    %905 = vmatprep.subr.mxu0 0.0
    %v906 = vand.u32 %v67, 4294901760
    %907 = vmatpush1.msra.mxu0 %v906
    %908 = vmatprep.subr.mxu0 0.0
    %v909 = vand.u32 %v68, 4294901760
    %910 = vmatpush1.msra.mxu0 %v909
    %911 = vmatprep.subr.mxu0 0.0
    %v912 = vand.u32 %v69, 4294901760
    %913 = vmatpush1.msra.mxu0 %v912
    %914 = vmatprep.subr.mxu0 0.0
    %v915 = vand.u32 %v70, 4294901760
    %916 = vmatpush1.msra.mxu0 %v915
    %917 = vmatprep.subr.mxu0 0.0
    %v918 = vand.u32 %v71, 4294901760
    %919 = vmatpush1.msra.mxu0 %v918
    %920 = vmatprep.subr.mxu0 0.0
    %v921 = vand.u32 %v72, 4294901760
    %922 = vmatpush1.msra.mxu0 %v921
    %923 = vmatprep.subr.mxu0 0.0
    %v924 = vand.u32 %v73, 4294901760
    %925 = vmatpush1.msra.mxu0 %v924
    %926 = vmatprep.subr.mxu0 0.0
    %v927 = vand.u32 %v74, 4294901760
    %928 = vmatpush1.msra.mxu0 %v927
    %v929 = vand.u32 %v42, 4294901760
    %930 = vmatprep.mubr.f32.mxu0 %v929
    %v931 = vand.u32 %v41, 4294901760
    %932 = vmatmul.mubr.f32.gmra.mrb[0].mxu0 %v931
    %v933 = vpop.f32.mrb[0].mxu0
    %v934 = vadd.f32 %v830, %v933
    %v935 = vpop.f32.mrb[0].mxu0
    %936 = vdwg.mxu0
    %p937 = scmp.eq.s32.totalorder 0, 0
    // Predicated region
    $region22: #{tpu_custom_call.1} parent=1 // pred_check
      %p938 = pneg %p937
    $region23: #{tpu_custom_call.1} parent=1 // pred_check_branch
      %940 = sbr.rel (%p938) target = $region25
    $region24: #{tpu_custom_call.1} parent=1 // pred_region
      %941 = vst [vmem:[#allocation2] sm:$0xff] %v934
    $region25: #{tpu_custom_call.1} parent=1 // pred_fallthru
      _
    %p942 = scmp.gt.s32.totalorder 0, 0
    // Predicated region
    $region26: #{tpu_custom_call.1} parent=1 // pred_check
      %p943 = pneg %p942
    $region27: #{tpu_custom_call.1} parent=1 // pred_check_branch
      %945 = sbr.rel (%p943) target = $region29
    $region28: #{tpu_custom_call.1} parent=1 // pred_region
      %v946 = vld [vmem:[#allocation2] sm:$0xff]
      %v947 = vadd.f32 %v946, %v934
      %948 = vst [vmem:[#allocation2] sm:$0xff] %v947
    $region29: #{tpu_custom_call.1} parent=1 // pred_fallthru
      _
    // Predicated region
    $region30: #{tpu_custom_call.1} parent=1 // pred_check
      %p949 = pneg %p937
    $region31: #{tpu_custom_call.1} parent=1 // pred_check_branch
      %951 = sbr.rel (%p949) target = $region33
    $region32: #{tpu_custom_call.1} parent=1 // pred_region
      %v952 = vld [vmem:[#allocation2] sm:$0xff]
      %v953 = vld [vmem:[%s2] sm:$0x1]
      %v955 = vlaneseq
      %v956 = vshrl.u32 %v955, 7
      %v957 = vsub.s32 0, %v956
      %v958 = vrot.slane %v953, %v957
      %v960 = vadd.f32 %v952, %v958
      %961 = vmax.xlane.f32.xlu0 %v960
      %v962 = vpop.xlane.xlu0 %961
      %v963 = vsub.f32 %v960, %v962
      %v964 = vmul.f32 %v963, 1.442695
      %v965 = vpow.pop %v964
      %966 = vadd.xlane.f32.xlu0 %v965
      %v967 = vpop.xlane.xlu0 %966
      %v968 = vlog2.pop %v967
      %v969 = vmul.f32 %v968, 0.6931472
      %v970 = vsub.f32 %v963, %v969
      %971 = vst [vmem:[#allocation8] sm:$0xff] %v970
    $region33: #{tpu_custom_call.1} parent=1 // pred_fallthru
      _
    // Predicated region
    $region34: #{tpu_custom_call.1} parent=1 // pred_check
      _
    $region35: #{tpu_custom_call.1} parent=1 // pred_check_branch
      %973 = sbr.rel (0) target = $region37
    $region36: #{tpu_custom_call.1} parent=1 // pred_region
      %s975 = ssub.s32 128, 128
      %976 = vsyncadd [#allocation5], %s975
      %s978 = sshll.u32 [#allocation8], 4
      %s979 = int_to_ptr.vmem [resolvable:$true] %s978
      %981 = dma.vmem_to_hbm [thread:$0]  %s979, 128, %s3, [#allocation5]
    $region37: #{tpu_custom_call.1} parent=1 // pred_fallthru
      _
    // Predicated region
    $region38: #{tpu_custom_call.1} parent=1 // pred_check
      _
    $region39: #{tpu_custom_call.1} parent=1 // pred_check_branch
      %983 = sbr.rel (0) target = $region41
    $region40: #{tpu_custom_call.1} parent=1 // pred_region
      %984 = dma.done [#allocation5], 128
    $region41: #{tpu_custom_call.1} parent=1 // pred_fallthru
      _
    %985 = vsyncpa [#allocation4], 1
    %986 = vsyncpa [#allocation7], 1
    %987 = vsyncpa [#allocation5], 1

</llo_original>
